<compile_context>
chip_gen: v7x
topology: tpu7x:2x2x1
jax: 0.10.0
libtpu: 0.0.40
codegen_flags: <defaults>
</compile_context>

<pallas_src>
import functools

import jax
import jax.numpy as jnp
from jax.experimental import pallas as pl
from jax.experimental.pallas import tpu as pltpu


# Original / padded feature dims.
D_IN, D_H1, D_H2, D_H3, D_OUT = 28 * 28, 500, 250, 125, 10
P_IN, P_H1, P_H2, P_H3, P_OUT = 896, 512, 256, 128, 128


def _round_up(x, m):
    return ((x + m - 1) // m) * m


def mlp_kernel(x_ref,
               w1_ref, b1_ref,
               w2_ref, b2_ref,
               w3_ref, b3_ref,
               w4_ref, b4_ref,
               o_ref):
    # Layer 1: (TM,896)bf16 @ (896,512)bf16 -> f32, +bias, ReLU, back to bf16 for MXU.
    h = jnp.dot(x_ref[...], w1_ref[...], preferred_element_type=jnp.float32)
    h = jnp.maximum(h + b1_ref[...], 0.0).astype(jnp.bfloat16)
    # Layer 2: (TM,512) @ (512,256)
    h = jnp.dot(h, w2_ref[...], preferred_element_type=jnp.float32)
    h = jnp.maximum(h + b2_ref[...], 0.0).astype(jnp.bfloat16)
    # Layer 3: (TM,256) @ (256,128)
    h = jnp.dot(h, w3_ref[...], preferred_element_type=jnp.float32)
    h = jnp.maximum(h + b3_ref[...], 0.0).astype(jnp.bfloat16)
    # Layer 4: (TM,128) @ (128,128), no activation. Lane-dense f32 store (128 lanes).
    h = jnp.dot(h, w4_ref[...], preferred_element_type=jnp.float32)
    o_ref[...] = (h + b4_ref[...]).astype(o_ref.dtype)


def pad_and_cast_params(params):
    """Zero-pad feature dims to lane multiples; cast weights to bf16 once (not per call)."""
    def pad2(a, rows, cols):
        return jnp.pad(a, ((0, rows - a.shape[0]), (0, cols - a.shape[1])))

    dims = [(P_IN, P_H1), (P_H1, P_H2), (P_H2, P_H3), (P_H3, P_OUT)]
    out = {}
    for i, (r, c) in enumerate(dims, start=1):
        out[f"w{i}"] = pad2(params[f"w{i}"], r, c).astype(jnp.bfloat16)
        out[f"b{i}"] = pad2(params[f"b{i}"], 1, c).astype(jnp.float32)
    return out


@functools.partial(jax.jit, static_argnames=("tm",))
def _mlp_padded_call(x_pad, pp, tm):
    b_pad = x_pad.shape[0]
    grid = (pl.cdiv(b_pad, tm),)

    def resident(shape):
        # Constant index_map -> block stays resident in VMEM across all grid steps.
        return pl.BlockSpec(shape, lambda i: (0, 0))

    return pl.pallas_call(
        mlp_kernel,
        out_shape=jax.ShapeDtypeStruct((b_pad, P_OUT), jnp.float32),
        grid=grid,
        in_specs=[
            pl.BlockSpec((tm, P_IN), lambda i: (i, 0)),
            resident((P_IN, P_H1)), resident((1, P_H1)),
            resident((P_H1, P_H2)), resident((1, P_H2)),
            resident((P_H2, P_H3)), resident((1, P_H3)),
            resident((P_H3, P_OUT)), resident((1, P_OUT)),
        ],
        out_specs=pl.BlockSpec((tm, P_OUT), lambda i: (i, 0)),
        compiler_params=pltpu.CompilerParams(
            dimension_semantics=("parallel",),
            vmem_limit_bytes=32 << 20,
        ),
    )(x_pad,
      pp["w1"], pp["b1"],
      pp["w2"], pp["b2"],
      pp["w3"], pp["b3"],
      pp["w4"], pp["b4"])


def mlp_mnist_forward(x, padded_params):
    """x: (B, 784) f32. padded_params: output of pad_and_cast_params."""
    B = x.shape[0]
    # Batch tile: up to 512 rows per grid step to amortize per-step overhead on large
    # batches; small batches round up to bf16 sublane packing (16) so the single tile
    # equals the full (tiny) padded array.
    tm = min(512, max(16, _round_up(B, 16)))
    b_pad = _round_up(B, tm)

    x_pad = jnp.pad(x, ((0, b_pad - B), (0, P_IN - D_IN))).astype(jnp.bfloat16)
    out_pad = _mlp_padded_call(x_pad, padded_params, tm)
    return out_pad[:B, :D_OUT]


def init_params(key):
    """Deterministic init mimicking nn.Linear's uniform(-1/sqrt(in), 1/sqrt(in))."""
    dims = [(D_IN, D_H1), (D_H1, D_H2), (D_H2, D_H3), (D_H3, D_OUT)]
    params = {}
    for i, (fan_in, fan_out) in enumerate(dims, start=1):
        key, kw, kb = jax.random.split(key, 3)
        bound = 1.0 / jnp.sqrt(float(fan_in))
        params[f"w{i}"] = jax.random.uniform(
            kw, (fan_in, fan_out), jnp.float32, -bound, bound)
        params[f"b{i}"] = jax.random.uniform(
            kb, (1, fan_out), jnp.float32, -bound, bound)
    return params


def reference_forward_f32(x, params):
    h = jnp.maximum(x @ params["w1"] + params["b1"], 0.0)
    h = jnp.maximum(h @ params["w2"] + params["b2"], 0.0)
    h = jnp.maximum(h @ params["w3"] + params["b3"], 0.0)
    return h @ params["w4"] + params["b4"]


def reference_forward_bf16(x, params):
    """Same bf16-input / f32-accumulate arithmetic as the kernel, in plain JAX."""
    def layer(h, w, b, relu):
        h = jnp.dot(h.astype(jnp.bfloat16), w.astype(jnp.bfloat16),
                    preferred_element_type=jnp.float32) + b
        return jnp.maximum(h, 0.0) if relu else h
    h = layer(x, params["w1"], params["b1"], True)
    h = layer(h, params["w2"], params["b2"], True)
    h = layer(h, params["w3"], params["b3"], True)
    return layer(h, params["w4"], params["b4"], False)


if __name__ == "__main__":
    key = jax.random.PRNGKey(0)
    key, kx = jax.random.split(key)
    B = 8
    x = jax.random.normal(kx, (B, D_IN), jnp.float32)

    params = init_params(key)
    padded_params = pad_and_cast_params(params)

    out = mlp_mnist_forward(x, padded_params)
    out = jax.block_until_ready(out)
    assert out.shape == (B, D_OUT), out.shape

    # Exact-arithmetic reference (bf16 inputs, f32 accumulation) — tight tolerance.
    ref_bf16 = reference_forward_bf16(x, params)
    assert jnp.allclose(out, ref_bf16, atol=1e-2, rtol=1e-2), \
        f"max abs err vs bf16 ref {jnp.max(jnp.abs(out - ref_bf16))}"

    # Full-precision reference — loose tolerance (bf16 MXU inputs).
    ref_f32 = reference_forward_f32(x, params)
    assert jnp.allclose(out, ref_f32, atol=1e-1, rtol=1e-1), \
        f"max abs err vs f32 ref {jnp.max(jnp.abs(out - ref_f32))}"

    print("KERNEL_OK")
</pallas_src>

<mosaic_0001>
module attributes {stable_mosaic.version = 11 : i64} {
  func.func @mlp_kernel(%arg0: i32, %arg1: memref<16x896xbf16, #tpu.memory_space<vmem>>, %arg2: memref<896x512xbf16, #tpu.memory_space<vmem>>, %arg3: memref<1x512xf32, #tpu.memory_space<vmem>>, %arg4: memref<512x256xbf16, #tpu.memory_space<vmem>>, %arg5: memref<1x256xf32, #tpu.memory_space<vmem>>, %arg6: memref<256x128xbf16, #tpu.memory_space<vmem>>, %arg7: memref<1x128xf32, #tpu.memory_space<vmem>>, %arg8: memref<128x128xbf16, #tpu.memory_space<vmem>>, %arg9: memref<1x128xf32, #tpu.memory_space<vmem>>, %arg10: memref<16x128xf32, #tpu.memory_space<vmem>>) attributes {dimension_semantics = [#tpu.dimension_semantics<parallel>], iteration_bounds = array<i64: 1>, scalar_prefetch = 0 : i64, scratch_operands = 0 : i64, tpu.core_type = #tpu.core_type<tc>, window_params = [{transform_indices = @transform_0, window_bounds = array<i64: 16, 896>}, {pipeline_mode = #tpu.pipeline_mode<synchronous>, transform_indices = @transform_1, window_bounds = array<i64: 896, 512>}, {pipeline_mode = #tpu.pipeline_mode<synchronous>, transform_indices = @transform_2, window_bounds = array<i64: 1, 512>}, {pipeline_mode = #tpu.pipeline_mode<synchronous>, transform_indices = @transform_3, window_bounds = array<i64: 512, 256>}, {pipeline_mode = #tpu.pipeline_mode<synchronous>, transform_indices = @transform_4, window_bounds = array<i64: 1, 256>}, {pipeline_mode = #tpu.pipeline_mode<synchronous>, transform_indices = @transform_5, window_bounds = array<i64: 256, 128>}, {pipeline_mode = #tpu.pipeline_mode<synchronous>, transform_indices = @transform_6, window_bounds = array<i64: 1, 128>}, {pipeline_mode = #tpu.pipeline_mode<synchronous>, transform_indices = @transform_7, window_bounds = array<i64: 128, 128>}, {pipeline_mode = #tpu.pipeline_mode<synchronous>, transform_indices = @transform_8, window_bounds = array<i64: 1, 128>}, {transform_indices = @transform_9, window_bounds = array<i64: 16, 128>}]} {
    %c0 = arith.constant 0 : index
    %c0_0 = arith.constant 0 : index
    %0 = vector.load %arg1[%c0, %c0_0] : memref<16x896xbf16, #tpu.memory_space<vmem>>, vector<16x896xbf16>
    %c0_1 = arith.constant 0 : index
    %c0_2 = arith.constant 0 : index
    %1 = vector.load %arg2[%c0_1, %c0_2] : memref<896x512xbf16, #tpu.memory_space<vmem>>, vector<896x512xbf16>
    %cst = arith.constant dense<0.000000e+00> : vector<16x512xf32>
    %2 = tpu.matmul %0, %1, %cst {dimension_numbers = #tpu.dot_dimension_numbers<[1], [0], [0], [1], [0, 0, 1, 1], [], []>} : vector<16x896xbf16>, vector<896x512xbf16>, vector<16x512xf32> -> vector<16x512xf32>
    %c0_3 = arith.constant 0 : index
    %c0_4 = arith.constant 0 : index
    %3 = vector.load %arg3[%c0_3, %c0_4] : memref<1x512xf32, #tpu.memory_space<vmem>>, vector<1x512xf32>
    %4 = vector.broadcast %3 : vector<1x512xf32> to vector<16x512xf32>
    %5 = arith.addf %2, %4 : vector<16x512xf32>
    %cst_5 = arith.constant 0.000000e+00 : f32
    %6 = vector.broadcast %cst_5 : f32 to vector<16x512xf32>
    %7 = arith.maximumf %5, %6 : vector<16x512xf32>
    %8 = arith.truncf %7 : vector<16x512xf32> to vector<16x512xbf16>
    %c0_6 = arith.constant 0 : index
    %c0_7 = arith.constant 0 : index
    %9 = vector.load %arg4[%c0_6, %c0_7] : memref<512x256xbf16, #tpu.memory_space<vmem>>, vector<512x256xbf16>
    %cst_8 = arith.constant dense<0.000000e+00> : vector<16x256xf32>
    %10 = tpu.matmul %8, %9, %cst_8 {dimension_numbers = #tpu.dot_dimension_numbers<[1], [0], [0], [1], [0, 0, 1, 1], [], []>} : vector<16x512xbf16>, vector<512x256xbf16>, vector<16x256xf32> -> vector<16x256xf32>
    %c0_9 = arith.constant 0 : index
    %c0_10 = arith.constant 0 : index
    %11 = vector.load %arg5[%c0_9, %c0_10] : memref<1x256xf32, #tpu.memory_space<vmem>>, vector<1x256xf32>
    %12 = vector.broadcast %11 : vector<1x256xf32> to vector<16x256xf32>
    %13 = arith.addf %10, %12 : vector<16x256xf32>
    %cst_11 = arith.constant 0.000000e+00 : f32
    %14 = vector.broadcast %cst_11 : f32 to vector<16x256xf32>
    %15 = arith.maximumf %13, %14 : vector<16x256xf32>
    %16 = arith.truncf %15 : vector<16x256xf32> to vector<16x256xbf16>
    %c0_12 = arith.constant 0 : index
    %c0_13 = arith.constant 0 : index
    %17 = vector.load %arg6[%c0_12, %c0_13] : memref<256x128xbf16, #tpu.memory_space<vmem>>, vector<256x128xbf16>
    %cst_14 = arith.constant dense<0.000000e+00> : vector<16x128xf32>
    %18 = tpu.matmul %16, %17, %cst_14 {dimension_numbers = #tpu.dot_dimension_numbers<[1], [0], [0], [1], [0, 0, 1, 1], [], []>} : vector<16x256xbf16>, vector<256x128xbf16>, vector<16x128xf32> -> vector<16x128xf32>
    %c0_15 = arith.constant 0 : index
    %c0_16 = arith.constant 0 : index
    %19 = vector.load %arg7[%c0_15, %c0_16] : memref<1x128xf32, #tpu.memory_space<vmem>>, vector<1x128xf32>
    %20 = vector.broadcast %19 : vector<1x128xf32> to vector<16x128xf32>
    %21 = arith.addf %18, %20 : vector<16x128xf32>
    %cst_17 = arith.constant 0.000000e+00 : f32
    %22 = vector.broadcast %cst_17 : f32 to vector<16x128xf32>
    %23 = arith.maximumf %21, %22 : vector<16x128xf32>
    %24 = arith.truncf %23 : vector<16x128xf32> to vector<16x128xbf16>
    %c0_18 = arith.constant 0 : index
    %c0_19 = arith.constant 0 : index
    %25 = vector.load %arg8[%c0_18, %c0_19] : memref<128x128xbf16, #tpu.memory_space<vmem>>, vector<128x128xbf16>
    %cst_20 = arith.constant dense<0.000000e+00> : vector<16x128xf32>
    %26 = tpu.matmul %24, %25, %cst_20 {dimension_numbers = #tpu.dot_dimension_numbers<[1], [0], [0], [1], [0, 0, 1, 1], [], []>} : vector<16x128xbf16>, vector<128x128xbf16>, vector<16x128xf32> -> vector<16x128xf32>
    %c0_21 = arith.constant 0 : index
    %c0_22 = arith.constant 0 : index
    %27 = vector.load %arg9[%c0_21, %c0_22] : memref<1x128xf32, #tpu.memory_space<vmem>>, vector<1x128xf32>
    %28 = vector.broadcast %27 : vector<1x128xf32> to vector<16x128xf32>
    %29 = arith.addf %26, %28 : vector<16x128xf32>
    %c0_23 = arith.constant 0 : index
    %c0_24 = arith.constant 0 : index
    %30 = vector.load %arg10[%c0_23, %c0_24] : memref<16x128xf32, #tpu.memory_space<vmem>>, vector<16x128xf32>
    tpu.vector_store %arg10[%c0_23, %c0_24], %29 {strides = array<i32>} : memref<16x128xf32, #tpu.memory_space<vmem>>, vector<16x128xf32>,
    return
  }
  func.func @transform_0(%arg0: i32) -> (i32, i32) {
    %c0_i32 = arith.constant 0 : i32
    %c0_i32_0 = arith.constant 0 : i32
    return %arg0, %c0_i32 : i32, i32
  }
  func.func @transform_1(%arg0: i32) -> (i32, i32) {
    %c0_i32 = arith.constant 0 : i32
    %c0_i32_0 = arith.constant 0 : i32
    %c0_i32_1 = arith.constant 0 : i32
    return %c0_i32, %c0_i32_0 : i32, i32
  }
  func.func @transform_2(%arg0: i32) -> (i32, i32) {
    %c0_i32 = arith.constant 0 : i32
    %c0_i32_0 = arith.constant 0 : i32
    %c0_i32_1 = arith.constant 0 : i32
    return %c0_i32, %c0_i32_0 : i32, i32
  }
  func.func @transform_3(%arg0: i32) -> (i32, i32) {
    %c0_i32 = arith.constant 0 : i32
    %c0_i32_0 = arith.constant 0 : i32
    %c0_i32_1 = arith.constant 0 : i32
    return %c0_i32, %c0_i32_0 : i32, i32
  }
  func.func @transform_4(%arg0: i32) -> (i32, i32) {
    %c0_i32 = arith.constant 0 : i32
    %c0_i32_0 = arith.constant 0 : i32
    %c0_i32_1 = arith.constant 0 : i32
    return %c0_i32, %c0_i32_0 : i32, i32
  }
  func.func @transform_5(%arg0: i32) -> (i32, i32) {
    %c0_i32 = arith.constant 0 : i32
    %c0_i32_0 = arith.constant 0 : i32
    %c0_i32_1 = arith.constant 0 : i32
    return %c0_i32, %c0_i32_0 : i32, i32
  }
  func.func @transform_6(%arg0: i32) -> (i32, i32) {
    %c0_i32 = arith.constant 0 : i32
    %c0_i32_0 = arith.constant 0 : i32
    %c0_i32_1 = arith.constant 0 : i32
    return %c0_i32, %c0_i32_0 : i32, i32
  }
  func.func @transform_7(%arg0: i32) -> (i32, i32) {
    %c0_i32 = arith.constant 0 : i32
    %c0_i32_0 = arith.constant 0 : i32
    %c0_i32_1 = arith.constant 0 : i32
    return %c0_i32, %c0_i32_0 : i32, i32
  }
  func.func @transform_8(%arg0: i32) -> (i32, i32) {
    %c0_i32 = arith.constant 0 : i32
    %c0_i32_0 = arith.constant 0 : i32
    %c0_i32_1 = arith.constant 0 : i32
    return %c0_i32, %c0_i32_0 : i32, i32
  }
  func.func @transform_9(%arg0: i32) -> (i32, i32) {
    %c0_i32 = arith.constant 0 : i32
    %c0_i32_0 = arith.constant 0 : i32
    return %arg0, %c0_i32 : i32, i32
  }
}

</mosaic_0001>

<llo_original>
// kernel: _mlp_padded_call.1
$region0: #{_mlp_padded_call.1}
  #allocation0 [shape = 'u32[]', space=smem, size = 0x4, offset = 0x4, fixed_abs, tag = 'smem constant byte address 0x4 - core index']
  #allocation1 [shape = 'u32[144,128]{1,0:T(1,128)}', space=vmem, size = 0x12000, scoped, tag = 'internal scratch']
  %s0 = inlined_call_operand.hbm [shape: bf16[16,896], index: 0, kind: input, shape index: {}]
  %s1 = inlined_call_operand.hbm [shape: bf16[896,512], index: 1, kind: input, shape index: {}]
  %s2 = inlined_call_operand.hbm [shape: f32[1,512], index: 2, kind: input, shape index: {}]
  %s3 = inlined_call_operand.hbm [shape: bf16[512,256], index: 3, kind: input, shape index: {}]
  %s4 = inlined_call_operand.vmem [shape: f32[1,256], index: 4, kind: input, shape index: {}]
  %s5 = inlined_call_operand.hbm [shape: bf16[256,128], index: 5, kind: input, shape index: {}]
  %s6 = inlined_call_operand.vmem [shape: f32[1,128], index: 6, kind: input, shape index: {}]
  %s7 = inlined_call_operand.hbm [shape: bf16[128,128], index: 7, kind: input, shape index: {}]
  %s8 = inlined_call_operand.vmem [shape: f32[1,128], index: 8, kind: input, shape index: {}]
  %s9 = inlined_call_operand.hbm [shape: f32[16,128], index: 9, kind: output, shape index: {}]
  %s10 = sld [smem:[#allocation0]]
  $region70: #{_mlp_padded_call.1} parent=0
    _
  %s12 = ssub.s32 1, %s10
  %s13 = scalar_select 0, %s12, %s10
  $region1: #{_mlp_padded_call.1} parent=0
    #allocation2 [shape = 'u8[28672]{0}', space=vmem, size = 0x7000, scoped, tag = 'input window, operand 0, single buffered']
    #allocation3 [shape = 's32[1]{0}', space=sflag, size = 0x4, scoped, tag = 'scoped memory for _mlp_padded_call.1']
    #allocation4 [shape = 's32[1]{0}', space=sflag, size = 0x4, scoped, tag = 'scoped memory for _mlp_padded_call.1']
    #allocation5 [shape = 'u8[917504]{0}', space=vmem, size = 0xe0000, scoped, tag = 'input window, operand 1, single buffered']
    #allocation6 [shape = 's32[1]{0}', space=sflag, size = 0x4, scoped, tag = 'scoped memory for _mlp_padded_call.1']
    #allocation7 [shape = 'u8[2048]{0}', space=vmem, size = 0x800, scoped, tag = 'input window, operand 2, single buffered']
    #allocation8 [shape = 'u8[262144]{0}', space=vmem, size = 0x40000, scoped, tag = 'input window, operand 3, single buffered']
    #allocation9 [shape = 's32[1]{0}', space=sflag, size = 0x4, scoped, tag = 'scoped memory for _mlp_padded_call.1']
    #allocation10 [shape = 'u8[65536]{0}', space=vmem, size = 0x10000, scoped, tag = 'input window, operand 5, single buffered']
    #allocation11 [shape = 'u8[32768]{0}', space=vmem, size = 0x8000, scoped, tag = 'input window, operand 7, single buffered']
    #allocation12 [shape = 's32[1]{0}', space=sflag, size = 0x4, scoped, tag = 'scoped memory for _mlp_padded_call.1']
    #allocation13 [shape = 'u8[8192]{0}', space=vmem, size = 0x2000, scoped, tag = 'output window, operand 0, single buffered']
    %14 = vsyncpa [#allocation3], 0
    %15 = vsyncpa [#allocation6], 0
    %16 = vsyncpa [#allocation9], 0
    %17 = vsyncpa [#allocation12], 0
    %18 = vsyncpa [#allocation4], 0
    // Predicated region
    $region2: #{_mlp_padded_call.1} parent=1 // pred_check
      _
    $region3: #{_mlp_padded_call.1} parent=1 // pred_check_branch
      %20 = sbr.rel (0) target = $region5
    $region4: #{_mlp_padded_call.1} parent=1 // pred_region
      %s22 = ssub.s32 896, 896
      %23 = vsyncadd [#allocation3], %s22
      %s24 = sshll.u32 [#allocation2], 4
      %s25 = int_to_ptr.vmem [resolvable:$true] %s24
      %30 = dma.hbm_to_vmem [thread:$0]  %s0, 896, %s25, [#allocation3], 448, 448, 28
    $region5: #{_mlp_padded_call.1} parent=1 // pred_fallthru
      _
    // Predicated region
    $region6: #{_mlp_padded_call.1} parent=1 // pred_check
      _
    $region7: #{_mlp_padded_call.1} parent=1 // pred_check_branch
      %32 = sbr.rel (0) target = $region9
    $region8: #{_mlp_padded_call.1} parent=1 // pred_region
      %s34 = ssub.s32 28672, 28672
      %35 = vsyncadd [#allocation6], %s34
      %s36 = sshll.u32 [#allocation5], 4
      %s37 = int_to_ptr.vmem [resolvable:$true] %s36
      %42 = dma.hbm_to_vmem [thread:$0]  %s1, 28672, %s37, [#allocation6], 256, 256, 16
    $region9: #{_mlp_padded_call.1} parent=1 // pred_fallthru
      _
    // Predicated region
    $region10: #{_mlp_padded_call.1} parent=1 // pred_check
      _
    $region11: #{_mlp_padded_call.1} parent=1 // pred_check_branch
      %44 = sbr.rel (0) target = $region13
    $region12: #{_mlp_padded_call.1} parent=1 // pred_region
      %s46 = ssub.s32 64, 64
      %47 = vsyncadd [#allocation6], %s46
      %s49 = sshll.u32 [#allocation7], 4
      %s50 = int_to_ptr.vmem [resolvable:$true] %s49
      %52 = dma.hbm_to_vmem [thread:$0]  %s2, 64, %s50, [#allocation6]
    $region13: #{_mlp_padded_call.1} parent=1 // pred_fallthru
      _
    // Predicated region
    $region14: #{_mlp_padded_call.1} parent=1 // pred_check
      _
    $region15: #{_mlp_padded_call.1} parent=1 // pred_check_branch
      %54 = sbr.rel (0) target = $region17
    $region16: #{_mlp_padded_call.1} parent=1 // pred_region
      %s56 = ssub.s32 8192, 8192
      %57 = vsyncadd [#allocation9], %s56
      %s58 = sshll.u32 [#allocation8], 4
      %s59 = int_to_ptr.vmem [resolvable:$true] %s58
      %64 = dma.hbm_to_vmem [thread:$0]  %s3, 8192, %s59, [#allocation9], 128, 128, 8
    $region17: #{_mlp_padded_call.1} parent=1 // pred_fallthru
      _
    // Predicated region
    $region18: #{_mlp_padded_call.1} parent=1 // pred_check
      _
    $region19: #{_mlp_padded_call.1} parent=1 // pred_check_branch
      %66 = sbr.rel (0) target = $region21
    $region20: #{_mlp_padded_call.1} parent=1 // pred_region
      _
    $region21: #{_mlp_padded_call.1} parent=1 // pred_fallthru
      _
    // Predicated region
    $region22: #{_mlp_padded_call.1} parent=1 // pred_check
      _
    $region23: #{_mlp_padded_call.1} parent=1 // pred_check_branch
      %68 = sbr.rel (0) target = $region25
    $region24: #{_mlp_padded_call.1} parent=1 // pred_region
      %s70 = ssub.s32 2048, 2048
      %71 = vsyncadd [#allocation9], %s70
      %s72 = sshll.u32 [#allocation10], 4
      %s73 = int_to_ptr.vmem [resolvable:$true] %s72
      %78 = dma.hbm_to_vmem [thread:$0]  %s5, 2048, %s73, [#allocation9], 64, 64, 4
    $region25: #{_mlp_padded_call.1} parent=1 // pred_fallthru
      _
    // Predicated region
    $region26: #{_mlp_padded_call.1} parent=1 // pred_check
      _
    $region27: #{_mlp_padded_call.1} parent=1 // pred_check_branch
      %80 = sbr.rel (0) target = $region29
    $region28: #{_mlp_padded_call.1} parent=1 // pred_region
      _
    $region29: #{_mlp_padded_call.1} parent=1 // pred_fallthru
      _
    // Predicated region
    $region30: #{_mlp_padded_call.1} parent=1 // pred_check
      _
    $region31: #{_mlp_padded_call.1} parent=1 // pred_check_branch
      %82 = sbr.rel (0) target = $region33
    $region32: #{_mlp_padded_call.1} parent=1 // pred_region
      %s84 = ssub.s32 1024, 1024
      %85 = vsyncadd [#allocation12], %s84
      %s86 = sshll.u32 [#allocation11], 4
      %s87 = int_to_ptr.vmem [resolvable:$true] %s86
      %92 = dma.hbm_to_vmem [thread:$0]  %s7, 1024, %s87, [#allocation12], 64, 64, 4
    $region33: #{_mlp_padded_call.1} parent=1 // pred_fallthru
      _
    // Predicated region
    $region34: #{_mlp_padded_call.1} parent=1 // pred_check
      _
    $region35: #{_mlp_padded_call.1} parent=1 // pred_check_branch
      %94 = sbr.rel (0) target = $region37
    $region36: #{_mlp_padded_call.1} parent=1 // pred_region
      _
    $region37: #{_mlp_padded_call.1} parent=1 // pred_fallthru
      _
    // Predicated region
    $region38: #{_mlp_padded_call.1} parent=1 // pred_check
      _
    $region39: #{_mlp_padded_call.1} parent=1 // pred_check_branch
      %96 = sbr.rel (0) target = $region41
    $region40: #{_mlp_padded_call.1} parent=1 // pred_region
      %97 = dma.done [#allocation3], 896
    $region41: #{_mlp_padded_call.1} parent=1 // pred_fallthru
      _
    // Predicated region
    $region42: #{_mlp_padded_call.1} parent=1 // pred_check
      _
    $region43: #{_mlp_padded_call.1} parent=1 // pred_check_branch
      %99 = sbr.rel (0) target = $region45
    $region44: #{_mlp_padded_call.1} parent=1 // pred_region
      %100 = dma.done [#allocation6], 28672
    $region45: #{_mlp_padded_call.1} parent=1 // pred_fallthru
      _
    // Predicated region
    $region46: #{_mlp_padded_call.1} parent=1 // pred_check
      _
    $region47: #{_mlp_padded_call.1} parent=1 // pred_check_branch
      %102 = sbr.rel (0) target = $region49
    $region48: #{_mlp_padded_call.1} parent=1 // pred_region
      %103 = dma.done [#allocation6], 64
    $region49: #{_mlp_padded_call.1} parent=1 // pred_fallthru
      _
    // Predicated region
    $region50: #{_mlp_padded_call.1} parent=1 // pred_check
      _
    $region51: #{_mlp_padded_call.1} parent=1 // pred_check_branch
      %105 = sbr.rel (0) target = $region53
    $region52: #{_mlp_padded_call.1} parent=1 // pred_region
      %106 = dma.done [#allocation9], 8192
    $region53: #{_mlp_padded_call.1} parent=1 // pred_fallthru
      _
    // Predicated region
    $region54: #{_mlp_padded_call.1} parent=1 // pred_check
      _
    $region55: #{_mlp_padded_call.1} parent=1 // pred_check_branch
      %108 = sbr.rel (0) target = $region57
    $region56: #{_mlp_padded_call.1} parent=1 // pred_region
      %109 = dma.done [#allocation9], 2048
    $region57: #{_mlp_padded_call.1} parent=1 // pred_fallthru
      _
    // Predicated region
    $region58: #{_mlp_padded_call.1} parent=1 // pred_check
      _
    $region59: #{_mlp_padded_call.1} parent=1 // pred_check_branch
      %111 = sbr.rel (0) target = $region61
    $region60: #{_mlp_padded_call.1} parent=1 // pred_region
      %112 = dma.done [#allocation12], 1024
    $region61: #{_mlp_padded_call.1} parent=1 // pred_fallthru
      _
    %v114 = vld [vmem:[#allocation2] sm:$0xff]
    %v115 = vld [vmem:[#allocation2 + $0x8] sm:$0xff]
    %v116 = vld [vmem:[#allocation2 + $0x10] sm:$0xff]
    %v117 = vld [vmem:[#allocation2 + $0x18] sm:$0xf]
    %v118 = vld [vmem:[#allocation2 + $0x1c] sm:$0xff]
    %v119 = vld [vmem:[#allocation2 + $0x24] sm:$0xff]
    %v120 = vld [vmem:[#allocation2 + $0x2c] sm:$0xff]
    %v121 = vld [vmem:[#allocation2 + $0x34] sm:$0xf]
    %v122 = vld [vmem:[#allocation5] sm:$0xff]
    %v123 = vld [vmem:[#allocation5 + $0x8] sm:$0xff]
    %v124 = vld [vmem:[#allocation5 + $0x10] sm:$0xff]
    %v125 = vld [vmem:[#allocation5 + $0x18] sm:$0xff]
    %v126 = vld [vmem:[#allocation5 + $0x20] sm:$0xff]
    %v127 = vld [vmem:[#allocation5 + $0x28] sm:$0xff]
    %v128 = vld [vmem:[#allocation5 + $0x30] sm:$0xff]
    %v129 = vld [vmem:[#allocation5 + $0x38] sm:$0xff]
    %v130 = vld [vmem:[#allocation5 + $0x40] sm:$0xff]
    %v131 = vld [vmem:[#allocation5 + $0x48] sm:$0xff]
    %v132 = vld [vmem:[#allocation5 + $0x50] sm:$0xff]
    %v133 = vld [vmem:[#allocation5 + $0x58] sm:$0xff]
    %v134 = vld [vmem:[#allocation5 + $0x60] sm:$0xff]
    %v135 = vld [vmem:[#allocation5 + $0x68] sm:$0xff]
    %v136 = vld [vmem:[#allocation5 + $0x70] sm:$0xff]
    %v137 = vld [vmem:[#allocation5 + $0x78] sm:$0xff]
    %v138 = vld [vmem:[#allocation5 + $0x80] sm:$0xff]
    %v139 = vld [vmem:[#allocation5 + $0x88] sm:$0xff]
    %v140 = vld [vmem:[#allocation5 + $0x90] sm:$0xff]
    %v141 = vld [vmem:[#allocation5 + $0x98] sm:$0xff]
    %v142 = vld [vmem:[#allocation5 + $0xa0] sm:$0xff]
    %v143 = vld [vmem:[#allocation5 + $0xa8] sm:$0xff]
    %v144 = vld [vmem:[#allocation5 + $0xb0] sm:$0xff]
    %v145 = vld [vmem:[#allocation5 + $0xb8] sm:$0xff]
    %v146 = vld [vmem:[#allocation5 + $0xc0] sm:$0xff]
    %v147 = vld [vmem:[#allocation5 + $0xc8] sm:$0xff]
    %v148 = vld [vmem:[#allocation5 + $0xd0] sm:$0xff]
    %v149 = vld [vmem:[#allocation5 + $0xd8] sm:$0xff]
    %v150 = vld [vmem:[#allocation5 + $0xe0] sm:$0xff]
    %v151 = vld [vmem:[#allocation5 + $0xe8] sm:$0xff]
    %v152 = vld [vmem:[#allocation5 + $0xf0] sm:$0xff]
    %v153 = vld [vmem:[#allocation5 + $0xf8] sm:$0xff]
    %v154 = vld [vmem:[#allocation5 + $0x100] sm:$0xff]
    %v155 = vld [vmem:[#allocation5 + $0x108] sm:$0xff]
    %v156 = vld [vmem:[#allocation5 + $0x110] sm:$0xff]
    %v157 = vld [vmem:[#allocation5 + $0x118] sm:$0xff]
    %v158 = vld [vmem:[#allocation5 + $0x120] sm:$0xff]
    %v159 = vld [vmem:[#allocation5 + $0x128] sm:$0xff]
    %v160 = vld [vmem:[#allocation5 + $0x130] sm:$0xff]
    %v161 = vld [vmem:[#allocation5 + $0x138] sm:$0xff]
    %v162 = vld [vmem:[#allocation5 + $0x140] sm:$0xff]
    %v163 = vld [vmem:[#allocation5 + $0x148] sm:$0xff]
    %v164 = vld [vmem:[#allocation5 + $0x150] sm:$0xff]
    %v165 = vld [vmem:[#allocation5 + $0x158] sm:$0xff]
    %v166 = vld [vmem:[#allocation5 + $0x160] sm:$0xff]
    %v167 = vld [vmem:[#allocation5 + $0x168] sm:$0xff]
    %v168 = vld [vmem:[#allocation5 + $0x170] sm:$0xff]
    %v169 = vld [vmem:[#allocation5 + $0x178] sm:$0xff]
    %v170 = vld [vmem:[#allocation5 + $0x180] sm:$0xff]
    %v171 = vld [vmem:[#allocation5 + $0x188] sm:$0xff]
    %v172 = vld [vmem:[#allocation5 + $0x190] sm:$0xff]
    %v173 = vld [vmem:[#allocation5 + $0x198] sm:$0xff]
    %v174 = vld [vmem:[#allocation5 + $0x1a0] sm:$0xff]
    %v175 = vld [vmem:[#allocation5 + $0x1a8] sm:$0xff]
    %v176 = vld [vmem:[#allocation5 + $0x1b0] sm:$0xff]
    %v177 = vld [vmem:[#allocation5 + $0x1b8] sm:$0xff]
    %v178 = vld [vmem:[#allocation5 + $0x1c0] sm:$0xff]
    %v179 = vld [vmem:[#allocation5 + $0x1c8] sm:$0xff]
    %v180 = vld [vmem:[#allocation5 + $0x1d0] sm:$0xff]
    %v181 = vld [vmem:[#allocation5 + $0x1d8] sm:$0xff]
    %v182 = vld [vmem:[#allocation5 + $0x1e0] sm:$0xff]
    %v183 = vld [vmem:[#allocation5 + $0x1e8] sm:$0xff]
    %v184 = vld [vmem:[#allocation5 + $0x1f0] sm:$0xff]
    %v185 = vld [vmem:[#allocation5 + $0x1f8] sm:$0xff]
    %v186 = vld [vmem:[#allocation5 + $0x200] sm:$0xff]
    %v187 = vld [vmem:[#allocation5 + $0x208] sm:$0xff]
    %v188 = vld [vmem:[#allocation5 + $0x210] sm:$0xff]
    %v189 = vld [vmem:[#allocation5 + $0x218] sm:$0xff]
    %v190 = vld [vmem:[#allocation5 + $0x220] sm:$0xff]
    %v191 = vld [vmem:[#allocation5 + $0x228] sm:$0xff]
    %v192 = vld [vmem:[#allocation5 + $0x230] sm:$0xff]
    %v193 = vld [vmem:[#allocation5 + $0x238] sm:$0xff]
    %v194 = vld [vmem:[#allocation5 + $0x240] sm:$0xff]
    %v195 = vld [vmem:[#allocation5 + $0x248] sm:$0xff]
    %v196 = vld [vmem:[#allocation5 + $0x250] sm:$0xff]
    %v197 = vld [vmem:[#allocation5 + $0x258] sm:$0xff]
    %v198 = vld [vmem:[#allocation5 + $0x260] sm:$0xff]
    %v199 = vld [vmem:[#allocation5 + $0x268] sm:$0xff]
    %v200 = vld [vmem:[#allocation5 + $0x270] sm:$0xff]
    %v201 = vld [vmem:[#allocation5 + $0x278] sm:$0xff]
    %v202 = vld [vmem:[#allocation5 + $0x280] sm:$0xff]
    %v203 = vld [vmem:[#allocation5 + $0x288] sm:$0xff]
    %v204 = vld [vmem:[#allocation5 + $0x290] sm:$0xff]
    %v205 = vld [vmem:[#allocation5 + $0x298] sm:$0xff]
    %v206 = vld [vmem:[#allocation5 + $0x2a0] sm:$0xff]
    %v207 = vld [vmem:[#allocation5 + $0x2a8] sm:$0xff]
    %v208 = vld [vmem:[#allocation5 + $0x2b0] sm:$0xff]
    %v209 = vld [vmem:[#allocation5 + $0x2b8] sm:$0xff]
    %v210 = vld [vmem:[#allocation5 + $0x2c0] sm:$0xff]
    %v211 = vld [vmem:[#allocation5 + $0x2c8] sm:$0xff]
    %v212 = vld [vmem:[#allocation5 + $0x2d0] sm:$0xff]
    %v213 = vld [vmem:[#allocation5 + $0x2d8] sm:$0xff]
    %v214 = vld [vmem:[#allocation5 + $0x2e0] sm:$0xff]
    %v215 = vld [vmem:[#allocation5 + $0x2e8] sm:$0xff]
    %v216 = vld [vmem:[#allocation5 + $0x2f0] sm:$0xff]
    %v217 = vld [vmem:[#allocation5 + $0x2f8] sm:$0xff]
    %v218 = vld [vmem:[#allocation5 + $0x300] sm:$0xff]
    %v219 = vld [vmem:[#allocation5 + $0x308] sm:$0xff]
    %v220 = vld [vmem:[#allocation5 + $0x310] sm:$0xff]
    %v221 = vld [vmem:[#allocation5 + $0x318] sm:$0xff]
    %v222 = vld [vmem:[#allocation5 + $0x320] sm:$0xff]
    %v223 = vld [vmem:[#allocation5 + $0x328] sm:$0xff]
    %v224 = vld [vmem:[#allocation5 + $0x330] sm:$0xff]
    %v225 = vld [vmem:[#allocation5 + $0x338] sm:$0xff]
    %v226 = vld [vmem:[#allocation5 + $0x340] sm:$0xff]
    %v227 = vld [vmem:[#allocation5 + $0x348] sm:$0xff]
    %v228 = vld [vmem:[#allocation5 + $0x350] sm:$0xff]
    %v229 = vld [vmem:[#allocation5 + $0x358] sm:$0xff]
    %v230 = vld [vmem:[#allocation5 + $0x360] sm:$0xff]
    %v231 = vld [vmem:[#allocation5 + $0x368] sm:$0xff]
    %v232 = vld [vmem:[#allocation5 + $0x370] sm:$0xff]
    %v233 = vld [vmem:[#allocation5 + $0x378] sm:$0xff]
    %v234 = vld [vmem:[#allocation5 + $0x380] sm:$0xff]
    %v235 = vld [vmem:[#allocation5 + $0x388] sm:$0xff]
    %v236 = vld [vmem:[#allocation5 + $0x390] sm:$0xff]
    %v237 = vld [vmem:[#allocation5 + $0x398] sm:$0xff]
    %v238 = vld [vmem:[#allocation5 + $0x3a0] sm:$0xff]
    %v239 = vld [vmem:[#allocation5 + $0x3a8] sm:$0xff]
    %v240 = vld [vmem:[#allocation5 + $0x3b0] sm:$0xff]
    %v241 = vld [vmem:[#allocation5 + $0x3b8] sm:$0xff]
    %v242 = vld [vmem:[#allocation5 + $0x3c0] sm:$0xff]
    %v243 = vld [vmem:[#allocation5 + $0x3c8] sm:$0xff]
    %v244 = vld [vmem:[#allocation5 + $0x3d0] sm:$0xff]
    %v245 = vld [vmem:[#allocation5 + $0x3d8] sm:$0xff]
    %v246 = vld [vmem:[#allocation5 + $0x3e0] sm:$0xff]
    %v247 = vld [vmem:[#allocation5 + $0x3e8] sm:$0xff]
    %v248 = vld [vmem:[#allocation5 + $0x3f0] sm:$0xff]
    %v249 = vld [vmem:[#allocation5 + $0x3f8] sm:$0xff]
    %v250 = vld [vmem:[#allocation5 + $0x400] sm:$0xff]
    %v251 = vld [vmem:[#allocation5 + $0x408] sm:$0xff]
    %v252 = vld [vmem:[#allocation5 + $0x410] sm:$0xff]
    %v253 = vld [vmem:[#allocation5 + $0x418] sm:$0xff]
    %v254 = vld [vmem:[#allocation5 + $0x420] sm:$0xff]
    %v255 = vld [vmem:[#allocation5 + $0x428] sm:$0xff]
    %v256 = vld [vmem:[#allocation5 + $0x430] sm:$0xff]
    %v257 = vld [vmem:[#allocation5 + $0x438] sm:$0xff]
    %v258 = vld [vmem:[#allocation5 + $0x440] sm:$0xff]
    %v259 = vld [vmem:[#allocation5 + $0x448] sm:$0xff]
    %v260 = vld [vmem:[#allocation5 + $0x450] sm:$0xff]
    %v261 = vld [vmem:[#allocation5 + $0x458] sm:$0xff]
    %v262 = vld [vmem:[#allocation5 + $0x460] sm:$0xff]
    %v263 = vld [vmem:[#allocation5 + $0x468] sm:$0xff]
    %v264 = vld [vmem:[#allocation5 + $0x470] sm:$0xff]
    %v265 = vld [vmem:[#allocation5 + $0x478] sm:$0xff]
    %v266 = vld [vmem:[#allocation5 + $0x480] sm:$0xff]
    %v267 = vld [vmem:[#allocation5 + $0x488] sm:$0xff]
    %v268 = vld [vmem:[#allocation5 + $0x490] sm:$0xff]
    %v269 = vld [vmem:[#allocation5 + $0x498] sm:$0xff]
    %v270 = vld [vmem:[#allocation5 + $0x4a0] sm:$0xff]
    %v271 = vld [vmem:[#allocation5 + $0x4a8] sm:$0xff]
    %v272 = vld [vmem:[#allocation5 + $0x4b0] sm:$0xff]
    %v273 = vld [vmem:[#allocation5 + $0x4b8] sm:$0xff]
    %v274 = vld [vmem:[#allocation5 + $0x4c0] sm:$0xff]
    %v275 = vld [vmem:[#allocation5 + $0x4c8] sm:$0xff]
    %v276 = vld [vmem:[#allocation5 + $0x4d0] sm:$0xff]
    %v277 = vld [vmem:[#allocation5 + $0x4d8] sm:$0xff]
    %v278 = vld [vmem:[#allocation5 + $0x4e0] sm:$0xff]
    %v279 = vld [vmem:[#allocation5 + $0x4e8] sm:$0xff]
    %v280 = vld [vmem:[#allocation5 + $0x4f0] sm:$0xff]
    %v281 = vld [vmem:[#allocation5 + $0x4f8] sm:$0xff]
    %v282 = vld [vmem:[#allocation5 + $0x500] sm:$0xff]
    %v283 = vld [vmem:[#allocation5 + $0x508] sm:$0xff]
    %v284 = vld [vmem:[#allocation5 + $0x510] sm:$0xff]
    %v285 = vld [vmem:[#allocation5 + $0x518] sm:$0xff]
    %v286 = vld [vmem:[#allocation5 + $0x520] sm:$0xff]
    %v287 = vld [vmem:[#allocation5 + $0x528] sm:$0xff]
    %v288 = vld [vmem:[#allocation5 + $0x530] sm:$0xff]
    %v289 = vld [vmem:[#allocation5 + $0x538] sm:$0xff]
    %v290 = vld [vmem:[#allocation5 + $0x540] sm:$0xff]
    %v291 = vld [vmem:[#allocation5 + $0x548] sm:$0xff]
    %v292 = vld [vmem:[#allocation5 + $0x550] sm:$0xff]
    %v293 = vld [vmem:[#allocation5 + $0x558] sm:$0xff]
    %v294 = vld [vmem:[#allocation5 + $0x560] sm:$0xff]
    %v295 = vld [vmem:[#allocation5 + $0x568] sm:$0xff]
    %v296 = vld [vmem:[#allocation5 + $0x570] sm:$0xff]
    %v297 = vld [vmem:[#allocation5 + $0x578] sm:$0xff]
    %v298 = vld [vmem:[#allocation5 + $0x580] sm:$0xff]
    %v299 = vld [vmem:[#allocation5 + $0x588] sm:$0xff]
    %v300 = vld [vmem:[#allocation5 + $0x590] sm:$0xff]
    %v301 = vld [vmem:[#allocation5 + $0x598] sm:$0xff]
    %v302 = vld [vmem:[#allocation5 + $0x5a0] sm:$0xff]
    %v303 = vld [vmem:[#allocation5 + $0x5a8] sm:$0xff]
    %v304 = vld [vmem:[#allocation5 + $0x5b0] sm:$0xff]
    %v305 = vld [vmem:[#allocation5 + $0x5b8] sm:$0xff]
    %v306 = vld [vmem:[#allocation5 + $0x5c0] sm:$0xff]
    %v307 = vld [vmem:[#allocation5 + $0x5c8] sm:$0xff]
    %v308 = vld [vmem:[#allocation5 + $0x5d0] sm:$0xff]
    %v309 = vld [vmem:[#allocation5 + $0x5d8] sm:$0xff]
    %v310 = vld [vmem:[#allocation5 + $0x5e0] sm:$0xff]
    %v311 = vld [vmem:[#allocation5 + $0x5e8] sm:$0xff]
    %v312 = vld [vmem:[#allocation5 + $0x5f0] sm:$0xff]
    %v313 = vld [vmem:[#allocation5 + $0x5f8] sm:$0xff]
    %v314 = vld [vmem:[#allocation5 + $0x600] sm:$0xff]
    %v315 = vld [vmem:[#allocation5 + $0x608] sm:$0xff]
    %v316 = vld [vmem:[#allocation5 + $0x610] sm:$0xff]
    %v317 = vld [vmem:[#allocation5 + $0x618] sm:$0xff]
    %v318 = vld [vmem:[#allocation5 + $0x620] sm:$0xff]
    %v319 = vld [vmem:[#allocation5 + $0x628] sm:$0xff]
    %v320 = vld [vmem:[#allocation5 + $0x630] sm:$0xff]
    %v321 = vld [vmem:[#allocation5 + $0x638] sm:$0xff]
    %v322 = vld [vmem:[#allocation5 + $0x640] sm:$0xff]
    %v323 = vld [vmem:[#allocation5 + $0x648] sm:$0xff]
    %v324 = vld [vmem:[#allocation5 + $0x650] sm:$0xff]
    %v325 = vld [vmem:[#allocation5 + $0x658] sm:$0xff]
    %v326 = vld [vmem:[#allocation5 + $0x660] sm:$0xff]
    %v327 = vld [vmem:[#allocation5 + $0x668] sm:$0xff]
    %v328 = vld [vmem:[#allocation5 + $0x670] sm:$0xff]
    %v329 = vld [vmem:[#allocation5 + $0x678] sm:$0xff]
    %v330 = vld [vmem:[#allocation5 + $0x680] sm:$0xff]
    %v331 = vld [vmem:[#allocation5 + $0x688] sm:$0xff]
    %v332 = vld [vmem:[#allocation5 + $0x690] sm:$0xff]
    %v333 = vld [vmem:[#allocation5 + $0x698] sm:$0xff]
    %v334 = vld [vmem:[#allocation5 + $0x6a0] sm:$0xff]
    %v335 = vld [vmem:[#allocation5 + $0x6a8] sm:$0xff]
    %v336 = vld [vmem:[#allocation5 + $0x6b0] sm:$0xff]
    %v337 = vld [vmem:[#allocation5 + $0x6b8] sm:$0xff]
    %v338 = vld [vmem:[#allocation5 + $0x6c0] sm:$0xff]
    %v339 = vld [vmem:[#allocation5 + $0x6c8] sm:$0xff]
    %v340 = vld [vmem:[#allocation5 + $0x6d0] sm:$0xff]
    %v341 = vld [vmem:[#allocation5 + $0x6d8] sm:$0xff]
    %v342 = vld [vmem:[#allocation5 + $0x6e0] sm:$0xff]
    %v343 = vld [vmem:[#allocation5 + $0x6e8] sm:$0xff]
    %v344 = vld [vmem:[#allocation5 + $0x6f0] sm:$0xff]
    %v345 = vld [vmem:[#allocation5 + $0x6f8] sm:$0xff]
    %v346 = vld [vmem:[#allocation7] sm:$0xf]
    %v348 = vlaneseq
    %v349 = vshrl.u32 %v348, 7
    %v350 = vsub.s32 0, %v349
    %v351 = vrot.slane %v346, %v350
    %v352 = vlaneseq
    %v353 = vshrl.u32 %v352, 7
    %v354 = vsub.s32 1, %v353
    %v355 = vrot.slane %v346, %v354
    %v356 = vlaneseq
    %v357 = vshrl.u32 %v356, 7
    %v358 = vsub.s32 2, %v357
    %v359 = vrot.slane %v346, %v358
    %v360 = vlaneseq
    %v361 = vshrl.u32 %v360, 7
    %v362 = vsub.s32 3, %v361
    %v363 = vrot.slane %v346, %v362
    %v376 = vunpack.c.l.b16 %v114
    %v377 = vunpack.c.h.b16 %v114
    %v378 = vunpack.c.l.b16 %v115
    %v379 = vunpack.c.h.b16 %v115
    %v380 = vunpack.c.l.b16 %v116
    %v381 = vunpack.c.h.b16 %v116
    %v382 = vunpack.c.l.b16 %v117
    %v383 = vunpack.c.l.b16 %v118
    %v384 = vunpack.c.h.b16 %v118
    %v385 = vunpack.c.l.b16 %v119
    %v386 = vunpack.c.h.b16 %v119
    %v387 = vunpack.c.l.b16 %v120
    %v388 = vunpack.c.h.b16 %v120
    %v389 = vunpack.c.l.b16 %v121
    %v390 = vpack.c.b16 %v383, %v376
    %v391 = vpack.c.b16 %v384, %v377
    %v392 = vpack.c.b16 %v385, %v378
    %v393 = vpack.c.b16 %v386, %v379
    %v394 = vpack.c.b16 %v387, %v380
    %v395 = vpack.c.b16 %v388, %v381
    %v396 = vpack.c.b16 %v389, %v382
    %v628 = vunpack.c.l.b16 %v122
    %v629 = vunpack.c.h.b16 %v122
    %v630 = vunpack.c.l.b16 %v123
    %v631 = vunpack.c.h.b16 %v123
    %v632 = vunpack.c.l.b16 %v124
    %v633 = vunpack.c.h.b16 %v124
    %v634 = vunpack.c.l.b16 %v125
    %v635 = vunpack.c.h.b16 %v125
    %v636 = vunpack.c.l.b16 %v126
    %v637 = vunpack.c.h.b16 %v126
    %v638 = vunpack.c.l.b16 %v127
    %v639 = vunpack.c.h.b16 %v127
    %v640 = vunpack.c.l.b16 %v128
    %v641 = vunpack.c.h.b16 %v128
    %v642 = vunpack.c.l.b16 %v129
    %v643 = vunpack.c.h.b16 %v129
    %v644 = vunpack.c.l.b16 %v130
    %v645 = vunpack.c.h.b16 %v130
    %v646 = vunpack.c.l.b16 %v131
    %v647 = vunpack.c.h.b16 %v131
    %v648 = vunpack.c.l.b16 %v132
    %v649 = vunpack.c.h.b16 %v132
    %v650 = vunpack.c.l.b16 %v133
    %v651 = vunpack.c.h.b16 %v133
    %v652 = vunpack.c.l.b16 %v134
    %v653 = vunpack.c.h.b16 %v134
    %v654 = vunpack.c.l.b16 %v135
    %v655 = vunpack.c.h.b16 %v135
    %v656 = vunpack.c.l.b16 %v136
    %v657 = vunpack.c.h.b16 %v136
    %v658 = vunpack.c.l.b16 %v137
    %v659 = vunpack.c.h.b16 %v137
    %v660 = vunpack.c.l.b16 %v138
    %v661 = vunpack.c.h.b16 %v138
    %v662 = vunpack.c.l.b16 %v139
    %v663 = vunpack.c.h.b16 %v139
    %v664 = vunpack.c.l.b16 %v140
    %v665 = vunpack.c.h.b16 %v140
    %v666 = vunpack.c.l.b16 %v141
    %v667 = vunpack.c.h.b16 %v141
    %v668 = vunpack.c.l.b16 %v142
    %v669 = vunpack.c.h.b16 %v142
    %v670 = vunpack.c.l.b16 %v143
    %v671 = vunpack.c.h.b16 %v143
    %v672 = vunpack.c.l.b16 %v144
    %v673 = vunpack.c.h.b16 %v144
    %v674 = vunpack.c.l.b16 %v145
    %v675 = vunpack.c.h.b16 %v145
    %v676 = vunpack.c.l.b16 %v146
    %v677 = vunpack.c.h.b16 %v146
    %v678 = vunpack.c.l.b16 %v147
    %v679 = vunpack.c.h.b16 %v147
    %v680 = vunpack.c.l.b16 %v148
    %v681 = vunpack.c.h.b16 %v148
    %v682 = vunpack.c.l.b16 %v149
    %v683 = vunpack.c.h.b16 %v149
    %v684 = vunpack.c.l.b16 %v150
    %v685 = vunpack.c.h.b16 %v150
    %v686 = vunpack.c.l.b16 %v151
    %v687 = vunpack.c.h.b16 %v151
    %v688 = vunpack.c.l.b16 %v152
    %v689 = vunpack.c.h.b16 %v152
    %v690 = vunpack.c.l.b16 %v153
    %v691 = vunpack.c.h.b16 %v153
    %v692 = vunpack.c.l.b16 %v154
    %v693 = vunpack.c.h.b16 %v154
    %v694 = vunpack.c.l.b16 %v155
    %v695 = vunpack.c.h.b16 %v155
    %v696 = vunpack.c.l.b16 %v156
    %v697 = vunpack.c.h.b16 %v156
    %v698 = vunpack.c.l.b16 %v157
    %v699 = vunpack.c.h.b16 %v157
    %v700 = vunpack.c.l.b16 %v158
    %v701 = vunpack.c.h.b16 %v158
    %v702 = vunpack.c.l.b16 %v159
    %v703 = vunpack.c.h.b16 %v159
    %v704 = vunpack.c.l.b16 %v160
    %v705 = vunpack.c.h.b16 %v160
    %v706 = vunpack.c.l.b16 %v161
    %v707 = vunpack.c.h.b16 %v161
    %v708 = vunpack.c.l.b16 %v162
    %v709 = vunpack.c.h.b16 %v162
    %v710 = vunpack.c.l.b16 %v163
    %v711 = vunpack.c.h.b16 %v163
    %v712 = vunpack.c.l.b16 %v164
    %v713 = vunpack.c.h.b16 %v164
    %v714 = vunpack.c.l.b16 %v165
    %v715 = vunpack.c.h.b16 %v165
    %v716 = vunpack.c.l.b16 %v166
    %v717 = vunpack.c.h.b16 %v166
    %v718 = vunpack.c.l.b16 %v167
    %v719 = vunpack.c.h.b16 %v167
    %v720 = vunpack.c.l.b16 %v168
    %v721 = vunpack.c.h.b16 %v168
    %v722 = vunpack.c.l.b16 %v169
    %v723 = vunpack.c.h.b16 %v169
    %v724 = vunpack.c.l.b16 %v170
    %v725 = vunpack.c.h.b16 %v170
    %v726 = vunpack.c.l.b16 %v171
    %v727 = vunpack.c.h.b16 %v171
    %v728 = vunpack.c.l.b16 %v172
    %v729 = vunpack.c.h.b16 %v172
    %v730 = vunpack.c.l.b16 %v173
    %v731 = vunpack.c.h.b16 %v173
    %v732 = vunpack.c.l.b16 %v174
    %v733 = vunpack.c.h.b16 %v174
    %v734 = vunpack.c.l.b16 %v175
    %v735 = vunpack.c.h.b16 %v175
    %v736 = vunpack.c.l.b16 %v176
    %v737 = vunpack.c.h.b16 %v176
    %v738 = vunpack.c.l.b16 %v177
    %v739 = vunpack.c.h.b16 %v177
    %v740 = vunpack.c.l.b16 %v178
    %v741 = vunpack.c.h.b16 %v178
    %v742 = vunpack.c.l.b16 %v179
    %v743 = vunpack.c.h.b16 %v179
    %v744 = vunpack.c.l.b16 %v180
    %v745 = vunpack.c.h.b16 %v180
    %v746 = vunpack.c.l.b16 %v181
    %v747 = vunpack.c.h.b16 %v181
    %v748 = vunpack.c.l.b16 %v182
    %v749 = vunpack.c.h.b16 %v182
    %v750 = vunpack.c.l.b16 %v183
    %v751 = vunpack.c.h.b16 %v183
    %v752 = vunpack.c.l.b16 %v184
    %v753 = vunpack.c.h.b16 %v184
    %v754 = vunpack.c.l.b16 %v185
    %v755 = vunpack.c.h.b16 %v185
    %v756 = vunpack.c.l.b16 %v186
    %v757 = vunpack.c.h.b16 %v186
    %v758 = vunpack.c.l.b16 %v187
    %v759 = vunpack.c.h.b16 %v187
    %v760 = vunpack.c.l.b16 %v188
    %v761 = vunpack.c.h.b16 %v188
    %v762 = vunpack.c.l.b16 %v189
    %v763 = vunpack.c.h.b16 %v189
    %v764 = vunpack.c.l.b16 %v190
    %v765 = vunpack.c.h.b16 %v190
    %v766 = vunpack.c.l.b16 %v191
    %v767 = vunpack.c.h.b16 %v191
    %v768 = vunpack.c.l.b16 %v192
    %v769 = vunpack.c.h.b16 %v192
    %v770 = vunpack.c.l.b16 %v193
    %v771 = vunpack.c.h.b16 %v193
    %v772 = vunpack.c.l.b16 %v194
    %v773 = vunpack.c.h.b16 %v194
    %v774 = vunpack.c.l.b16 %v195
    %v775 = vunpack.c.h.b16 %v195
    %v776 = vunpack.c.l.b16 %v196
    %v777 = vunpack.c.h.b16 %v196
    %v778 = vunpack.c.l.b16 %v197
    %v779 = vunpack.c.h.b16 %v197
    %v780 = vunpack.c.l.b16 %v198
    %v781 = vunpack.c.h.b16 %v198
    %v782 = vunpack.c.l.b16 %v199
    %v783 = vunpack.c.h.b16 %v199
    %v784 = vunpack.c.l.b16 %v200
    %v785 = vunpack.c.h.b16 %v200
    %v786 = vunpack.c.l.b16 %v201
    %v787 = vunpack.c.h.b16 %v201
    %v788 = vunpack.c.l.b16 %v202
    %v789 = vunpack.c.h.b16 %v202
    %v790 = vunpack.c.l.b16 %v203
    %v791 = vunpack.c.h.b16 %v203
    %v792 = vunpack.c.l.b16 %v204
    %v793 = vunpack.c.h.b16 %v204
    %v794 = vunpack.c.l.b16 %v205
    %v795 = vunpack.c.h.b16 %v205
    %v796 = vunpack.c.l.b16 %v206
    %v797 = vunpack.c.h.b16 %v206
    %v798 = vunpack.c.l.b16 %v207
    %v799 = vunpack.c.h.b16 %v207
    %v800 = vunpack.c.l.b16 %v208
    %v801 = vunpack.c.h.b16 %v208
    %v802 = vunpack.c.l.b16 %v209
    %v803 = vunpack.c.h.b16 %v209
    %v804 = vunpack.c.l.b16 %v210
    %v805 = vunpack.c.h.b16 %v210
    %v806 = vunpack.c.l.b16 %v211
    %v807 = vunpack.c.h.b16 %v211
    %v808 = vunpack.c.l.b16 %v212
    %v809 = vunpack.c.h.b16 %v212
    %v810 = vunpack.c.l.b16 %v213
    %v811 = vunpack.c.h.b16 %v213
    %v812 = vunpack.c.l.b16 %v214
    %v813 = vunpack.c.h.b16 %v214
    %v814 = vunpack.c.l.b16 %v215
    %v815 = vunpack.c.h.b16 %v215
    %v816 = vunpack.c.l.b16 %v216
    %v817 = vunpack.c.h.b16 %v216
    %v818 = vunpack.c.l.b16 %v217
    %v819 = vunpack.c.h.b16 %v217
    %v820 = vunpack.c.l.b16 %v218
    %v821 = vunpack.c.h.b16 %v218
    %v822 = vunpack.c.l.b16 %v219
    %v823 = vunpack.c.h.b16 %v219
    %v824 = vunpack.c.l.b16 %v220
    %v825 = vunpack.c.h.b16 %v220
    %v826 = vunpack.c.l.b16 %v221
    %v827 = vunpack.c.h.b16 %v221
    %v828 = vunpack.c.l.b16 %v222
    %v829 = vunpack.c.h.b16 %v222
    %v830 = vunpack.c.l.b16 %v223
    %v831 = vunpack.c.h.b16 %v223
    %v832 = vunpack.c.l.b16 %v224
    %v833 = vunpack.c.h.b16 %v224
    %v834 = vunpack.c.l.b16 %v225
    %v835 = vunpack.c.h.b16 %v225
    %v836 = vunpack.c.l.b16 %v226
    %v837 = vunpack.c.h.b16 %v226
    %v838 = vunpack.c.l.b16 %v227
    %v839 = vunpack.c.h.b16 %v227
    %v840 = vunpack.c.l.b16 %v228
    %v841 = vunpack.c.h.b16 %v228
    %v842 = vunpack.c.l.b16 %v229
    %v843 = vunpack.c.h.b16 %v229
    %v844 = vunpack.c.l.b16 %v230
    %v845 = vunpack.c.h.b16 %v230
    %v846 = vunpack.c.l.b16 %v231
    %v847 = vunpack.c.h.b16 %v231
    %v848 = vunpack.c.l.b16 %v232
    %v849 = vunpack.c.h.b16 %v232
    %v850 = vunpack.c.l.b16 %v233
    %v851 = vunpack.c.h.b16 %v233
    %v852 = vunpack.c.l.b16 %v234
    %v853 = vunpack.c.h.b16 %v234
    %v854 = vunpack.c.l.b16 %v235
    %v855 = vunpack.c.h.b16 %v235
    %v856 = vunpack.c.l.b16 %v236
    %v857 = vunpack.c.h.b16 %v236
    %v858 = vunpack.c.l.b16 %v237
    %v859 = vunpack.c.h.b16 %v237
    %v860 = vunpack.c.l.b16 %v238
    %v861 = vunpack.c.h.b16 %v238
    %v862 = vunpack.c.l.b16 %v239
    %v863 = vunpack.c.h.b16 %v239
    %v864 = vunpack.c.l.b16 %v240
    %v865 = vunpack.c.h.b16 %v240
    %v866 = vunpack.c.l.b16 %v241
    %v867 = vunpack.c.h.b16 %v241
    %v868 = vunpack.c.l.b16 %v242
    %v869 = vunpack.c.h.b16 %v242
    %v870 = vunpack.c.l.b16 %v243
    %v871 = vunpack.c.h.b16 %v243
    %v872 = vunpack.c.l.b16 %v244
    %v873 = vunpack.c.h.b16 %v244
    %v874 = vunpack.c.l.b16 %v245
    %v875 = vunpack.c.h.b16 %v245
    %v876 = vunpack.c.l.b16 %v246
    %v877 = vunpack.c.h.b16 %v246
    %v878 = vunpack.c.l.b16 %v247
    %v879 = vunpack.c.h.b16 %v247
    %v880 = vunpack.c.l.b16 %v248
    %v881 = vunpack.c.h.b16 %v248
    %v882 = vunpack.c.l.b16 %v249
    %v883 = vunpack.c.h.b16 %v249
    %v884 = vunpack.c.l.b16 %v250
    %v885 = vunpack.c.h.b16 %v250
    %v886 = vunpack.c.l.b16 %v251
    %v887 = vunpack.c.h.b16 %v251
    %v888 = vunpack.c.l.b16 %v252
    %v889 = vunpack.c.h.b16 %v252
    %v890 = vunpack.c.l.b16 %v253
    %v891 = vunpack.c.h.b16 %v253
    %v892 = vunpack.c.l.b16 %v254
    %v893 = vunpack.c.h.b16 %v254
    %v894 = vunpack.c.l.b16 %v255
    %v895 = vunpack.c.h.b16 %v255
    %v896 = vunpack.c.l.b16 %v256
    %v897 = vunpack.c.h.b16 %v256
    %v898 = vunpack.c.l.b16 %v257
    %v899 = vunpack.c.h.b16 %v257
    %v900 = vunpack.c.l.b16 %v258
    %v901 = vunpack.c.h.b16 %v258
    %v902 = vunpack.c.l.b16 %v259
    %v903 = vunpack.c.h.b16 %v259
    %v904 = vunpack.c.l.b16 %v260
    %v905 = vunpack.c.h.b16 %v260
    %v906 = vunpack.c.l.b16 %v261
    %v907 = vunpack.c.h.b16 %v261
    %v908 = vunpack.c.l.b16 %v262
    %v909 = vunpack.c.h.b16 %v262
    %v910 = vunpack.c.l.b16 %v263
    %v911 = vunpack.c.h.b16 %v263
    %v912 = vunpack.c.l.b16 %v264
    %v913 = vunpack.c.h.b16 %v264
    %v914 = vunpack.c.l.b16 %v265
    %v915 = vunpack.c.h.b16 %v265
    %v916 = vunpack.c.l.b16 %v266
    %v917 = vunpack.c.h.b16 %v266
    %v918 = vunpack.c.l.b16 %v267
    %v919 = vunpack.c.h.b16 %v267
    %v920 = vunpack.c.l.b16 %v268
    %v921 = vunpack.c.h.b16 %v268
    %v922 = vunpack.c.l.b16 %v269
    %v923 = vunpack.c.h.b16 %v269
    %v924 = vunpack.c.l.b16 %v270
    %v925 = vunpack.c.h.b16 %v270
    %v926 = vunpack.c.l.b16 %v271
    %v927 = vunpack.c.h.b16 %v271
    %v928 = vunpack.c.l.b16 %v272
    %v929 = vunpack.c.h.b16 %v272
    %v930 = vunpack.c.l.b16 %v273
    %v931 = vunpack.c.h.b16 %v273
    %v932 = vunpack.c.l.b16 %v274
    %v933 = vunpack.c.h.b16 %v274
    %v934 = vunpack.c.l.b16 %v275
    %v935 = vunpack.c.h.b16 %v275
    %v936 = vunpack.c.l.b16 %v276
    %v937 = vunpack.c.h.b16 %v276
    %v938 = vunpack.c.l.b16 %v277
    %v939 = vunpack.c.h.b16 %v277
    %v940 = vunpack.c.l.b16 %v278
    %v941 = vunpack.c.h.b16 %v278
    %v942 = vunpack.c.l.b16 %v279
    %v943 = vunpack.c.h.b16 %v279
    %v944 = vunpack.c.l.b16 %v280
    %v945 = vunpack.c.h.b16 %v280
    %v946 = vunpack.c.l.b16 %v281
    %v947 = vunpack.c.h.b16 %v281
    %v948 = vunpack.c.l.b16 %v282
    %v949 = vunpack.c.h.b16 %v282
    %v950 = vunpack.c.l.b16 %v283
    %v951 = vunpack.c.h.b16 %v283
    %v952 = vunpack.c.l.b16 %v284
    %v953 = vunpack.c.h.b16 %v284
    %v954 = vunpack.c.l.b16 %v285
    %v955 = vunpack.c.h.b16 %v285
    %v956 = vunpack.c.l.b16 %v286
    %v957 = vunpack.c.h.b16 %v286
    %v958 = vunpack.c.l.b16 %v287
    %v959 = vunpack.c.h.b16 %v287
    %v960 = vunpack.c.l.b16 %v288
    %v961 = vunpack.c.h.b16 %v288
    %v962 = vunpack.c.l.b16 %v289
    %v963 = vunpack.c.h.b16 %v289
    %v964 = vunpack.c.l.b16 %v290
    %v965 = vunpack.c.h.b16 %v290
    %v966 = vunpack.c.l.b16 %v291
    %v967 = vunpack.c.h.b16 %v291
    %v968 = vunpack.c.l.b16 %v292
    %v969 = vunpack.c.h.b16 %v292
    %v970 = vunpack.c.l.b16 %v293
    %v971 = vunpack.c.h.b16 %v293
    %v972 = vunpack.c.l.b16 %v294
    %v973 = vunpack.c.h.b16 %v294
    %v974 = vunpack.c.l.b16 %v295
    %v975 = vunpack.c.h.b16 %v295
    %v976 = vunpack.c.l.b16 %v296
    %v977 = vunpack.c.h.b16 %v296
    %v978 = vunpack.c.l.b16 %v297
    %v979 = vunpack.c.h.b16 %v297
    %v980 = vunpack.c.l.b16 %v298
    %v981 = vunpack.c.h.b16 %v298
    %v982 = vunpack.c.l.b16 %v299
    %v983 = vunpack.c.h.b16 %v299
    %v984 = vunpack.c.l.b16 %v300
    %v985 = vunpack.c.h.b16 %v300
    %v986 = vunpack.c.l.b16 %v301
    %v987 = vunpack.c.h.b16 %v301
    %v988 = vunpack.c.l.b16 %v302
    %v989 = vunpack.c.h.b16 %v302
    %v990 = vunpack.c.l.b16 %v303
    %v991 = vunpack.c.h.b16 %v303
    %v992 = vunpack.c.l.b16 %v304
    %v993 = vunpack.c.h.b16 %v304
    %v994 = vunpack.c.l.b16 %v305
    %v995 = vunpack.c.h.b16 %v305
    %v996 = vunpack.c.l.b16 %v306
    %v997 = vunpack.c.h.b16 %v306
    %v998 = vunpack.c.l.b16 %v307
    %v999 = vunpack.c.h.b16 %v307
    %v1000 = vunpack.c.l.b16 %v308
    %v1001 = vunpack.c.h.b16 %v308
    %v1002 = vunpack.c.l.b16 %v309
    %v1003 = vunpack.c.h.b16 %v309
    %v1004 = vunpack.c.l.b16 %v310
    %v1005 = vunpack.c.h.b16 %v310
    %v1006 = vunpack.c.l.b16 %v311
    %v1007 = vunpack.c.h.b16 %v311
    %v1008 = vunpack.c.l.b16 %v312
    %v1009 = vunpack.c.h.b16 %v312
    %v1010 = vunpack.c.l.b16 %v313
    %v1011 = vunpack.c.h.b16 %v313
    %v1012 = vunpack.c.l.b16 %v314
    %v1013 = vunpack.c.h.b16 %v314
    %v1014 = vunpack.c.l.b16 %v315
    %v1015 = vunpack.c.h.b16 %v315
    %v1016 = vunpack.c.l.b16 %v316
    %v1017 = vunpack.c.h.b16 %v316
    %v1018 = vunpack.c.l.b16 %v317
    %v1019 = vunpack.c.h.b16 %v317
    %v1020 = vunpack.c.l.b16 %v318
    %v1021 = vunpack.c.h.b16 %v318
    %v1022 = vunpack.c.l.b16 %v319
    %v1023 = vunpack.c.h.b16 %v319
    %v1024 = vunpack.c.l.b16 %v320
    %v1025 = vunpack.c.h.b16 %v320
    %v1026 = vunpack.c.l.b16 %v321
    %v1027 = vunpack.c.h.b16 %v321
    %v1028 = vunpack.c.l.b16 %v322
    %v1029 = vunpack.c.h.b16 %v322
    %v1030 = vunpack.c.l.b16 %v323
    %v1031 = vunpack.c.h.b16 %v323
    %v1032 = vunpack.c.l.b16 %v324
    %v1033 = vunpack.c.h.b16 %v324
    %v1034 = vunpack.c.l.b16 %v325
    %v1035 = vunpack.c.h.b16 %v325
    %v1036 = vunpack.c.l.b16 %v326
    %v1037 = vunpack.c.h.b16 %v326
    %v1038 = vunpack.c.l.b16 %v327
    %v1039 = vunpack.c.h.b16 %v327
    %v1040 = vunpack.c.l.b16 %v328
    %v1041 = vunpack.c.h.b16 %v328
    %v1042 = vunpack.c.l.b16 %v329
    %v1043 = vunpack.c.h.b16 %v329
    %v1044 = vunpack.c.l.b16 %v330
    %v1045 = vunpack.c.h.b16 %v330
    %v1046 = vunpack.c.l.b16 %v331
    %v1047 = vunpack.c.h.b16 %v331
    %v1048 = vunpack.c.l.b16 %v332
    %v1049 = vunpack.c.h.b16 %v332
    %v1050 = vunpack.c.l.b16 %v333
    %v1051 = vunpack.c.h.b16 %v333
    %v1052 = vunpack.c.l.b16 %v334
    %v1053 = vunpack.c.h.b16 %v334
    %v1054 = vunpack.c.l.b16 %v335
    %v1055 = vunpack.c.h.b16 %v335
    %v1056 = vunpack.c.l.b16 %v336
    %v1057 = vunpack.c.h.b16 %v336
    %v1058 = vunpack.c.l.b16 %v337
    %v1059 = vunpack.c.h.b16 %v337
    %v1060 = vunpack.c.l.b16 %v338
    %v1061 = vunpack.c.h.b16 %v338
    %v1062 = vunpack.c.l.b16 %v339
    %v1063 = vunpack.c.h.b16 %v339
    %v1064 = vunpack.c.l.b16 %v340
    %v1065 = vunpack.c.h.b16 %v340
    %v1066 = vunpack.c.l.b16 %v341
    %v1067 = vunpack.c.h.b16 %v341
    %v1068 = vunpack.c.l.b16 %v342
    %v1069 = vunpack.c.h.b16 %v342
    %v1070 = vunpack.c.l.b16 %v343
    %v1071 = vunpack.c.h.b16 %v343
    %v1072 = vunpack.c.l.b16 %v344
    %v1073 = vunpack.c.h.b16 %v344
    %v1074 = vunpack.c.l.b16 %v345
    %v1075 = vunpack.c.h.b16 %v345
    %v1076 = vpack.c.b16 %v632, %v628
    %v1077 = vpack.c.b16 %v633, %v629
    %v1078 = vpack.c.b16 %v634, %v630
    %v1079 = vpack.c.b16 %v635, %v631
    %v1080 = vpack.c.b16 %v640, %v636
    %v1081 = vpack.c.b16 %v641, %v637
    %v1082 = vpack.c.b16 %v642, %v638
    %v1083 = vpack.c.b16 %v643, %v639
    %v1084 = vpack.c.b16 %v648, %v644
    %v1085 = vpack.c.b16 %v649, %v645
    %v1086 = vpack.c.b16 %v650, %v646
    %v1087 = vpack.c.b16 %v651, %v647
    %v1088 = vpack.c.b16 %v656, %v652
    %v1089 = vpack.c.b16 %v657, %v653
    %v1090 = vpack.c.b16 %v658, %v654
    %v1091 = vpack.c.b16 %v659, %v655
    %v1092 = vpack.c.b16 %v664, %v660
    %v1093 = vpack.c.b16 %v665, %v661
    %v1094 = vpack.c.b16 %v666, %v662
    %v1095 = vpack.c.b16 %v667, %v663
    %v1096 = vpack.c.b16 %v672, %v668
    %v1097 = vpack.c.b16 %v673, %v669
    %v1098 = vpack.c.b16 %v674, %v670
    %v1099 = vpack.c.b16 %v675, %v671
    %v1100 = vpack.c.b16 %v680, %v676
    %v1101 = vpack.c.b16 %v681, %v677
    %v1102 = vpack.c.b16 %v682, %v678
    %v1103 = vpack.c.b16 %v683, %v679
    %v1104 = vpack.c.b16 %v688, %v684
    %v1105 = vpack.c.b16 %v689, %v685
    %v1106 = vpack.c.b16 %v690, %v686
    %v1107 = vpack.c.b16 %v691, %v687
    %v1108 = vpack.c.b16 %v696, %v692
    %v1109 = vpack.c.b16 %v697, %v693
    %v1110 = vpack.c.b16 %v698, %v694
    %v1111 = vpack.c.b16 %v699, %v695
    %v1112 = vpack.c.b16 %v704, %v700
    %v1113 = vpack.c.b16 %v705, %v701
    %v1114 = vpack.c.b16 %v706, %v702
    %v1115 = vpack.c.b16 %v707, %v703
    %v1116 = vpack.c.b16 %v712, %v708
    %v1117 = vpack.c.b16 %v713, %v709
    %v1118 = vpack.c.b16 %v714, %v710
    %v1119 = vpack.c.b16 %v715, %v711
    %v1120 = vpack.c.b16 %v720, %v716
    %v1121 = vpack.c.b16 %v721, %v717
    %v1122 = vpack.c.b16 %v722, %v718
    %v1123 = vpack.c.b16 %v723, %v719
    %v1124 = vpack.c.b16 %v728, %v724
    %v1125 = vpack.c.b16 %v729, %v725
    %v1126 = vpack.c.b16 %v730, %v726
    %v1127 = vpack.c.b16 %v731, %v727
    %v1128 = vpack.c.b16 %v736, %v732
    %v1129 = vpack.c.b16 %v737, %v733
    %v1130 = vpack.c.b16 %v738, %v734
    %v1131 = vpack.c.b16 %v739, %v735
    %v1132 = vpack.c.b16 %v744, %v740
    %v1133 = vpack.c.b16 %v745, %v741
    %v1134 = vpack.c.b16 %v746, %v742
    %v1135 = vpack.c.b16 %v747, %v743
    %v1136 = vpack.c.b16 %v752, %v748
    %v1137 = vpack.c.b16 %v753, %v749
    %v1138 = vpack.c.b16 %v754, %v750
    %v1139 = vpack.c.b16 %v755, %v751
    %v1140 = vpack.c.b16 %v760, %v756
    %v1141 = vpack.c.b16 %v761, %v757
    %v1142 = vpack.c.b16 %v762, %v758
    %v1143 = vpack.c.b16 %v763, %v759
    %v1144 = vpack.c.b16 %v768, %v764
    %v1145 = vpack.c.b16 %v769, %v765
    %v1146 = vpack.c.b16 %v770, %v766
    %v1147 = vpack.c.b16 %v771, %v767
    %v1148 = vpack.c.b16 %v776, %v772
    %v1149 = vpack.c.b16 %v777, %v773
    %v1150 = vpack.c.b16 %v778, %v774
    %v1151 = vpack.c.b16 %v779, %v775
    %v1152 = vpack.c.b16 %v784, %v780
    %v1153 = vpack.c.b16 %v785, %v781
    %v1154 = vpack.c.b16 %v786, %v782
    %v1155 = vpack.c.b16 %v787, %v783
    %v1156 = vpack.c.b16 %v792, %v788
    %v1157 = vpack.c.b16 %v793, %v789
    %v1158 = vpack.c.b16 %v794, %v790
    %v1159 = vpack.c.b16 %v795, %v791
    %v1160 = vpack.c.b16 %v800, %v796
    %v1161 = vpack.c.b16 %v801, %v797
    %v1162 = vpack.c.b16 %v802, %v798
    %v1163 = vpack.c.b16 %v803, %v799
    %v1164 = vpack.c.b16 %v808, %v804
    %v1165 = vpack.c.b16 %v809, %v805
    %v1166 = vpack.c.b16 %v810, %v806
    %v1167 = vpack.c.b16 %v811, %v807
    %v1168 = vpack.c.b16 %v816, %v812
    %v1169 = vpack.c.b16 %v817, %v813
    %v1170 = vpack.c.b16 %v818, %v814
    %v1171 = vpack.c.b16 %v819, %v815
    %v1172 = vpack.c.b16 %v824, %v820
    %v1173 = vpack.c.b16 %v825, %v821
    %v1174 = vpack.c.b16 %v826, %v822
    %v1175 = vpack.c.b16 %v827, %v823
    %v1176 = vpack.c.b16 %v832, %v828
    %v1177 = vpack.c.b16 %v833, %v829
    %v1178 = vpack.c.b16 %v834, %v830
    %v1179 = vpack.c.b16 %v835, %v831
    %v1180 = vpack.c.b16 %v840, %v836
    %v1181 = vpack.c.b16 %v841, %v837
    %v1182 = vpack.c.b16 %v842, %v838
    %v1183 = vpack.c.b16 %v843, %v839
    %v1184 = vpack.c.b16 %v848, %v844
    %v1185 = vpack.c.b16 %v849, %v845
    %v1186 = vpack.c.b16 %v850, %v846
    %v1187 = vpack.c.b16 %v851, %v847
    %v1188 = vpack.c.b16 %v856, %v852
    %v1189 = vpack.c.b16 %v857, %v853
    %v1190 = vpack.c.b16 %v858, %v854
    %v1191 = vpack.c.b16 %v859, %v855
    %v1192 = vpack.c.b16 %v864, %v860
    %v1193 = vpack.c.b16 %v865, %v861
    %v1194 = vpack.c.b16 %v866, %v862
    %v1195 = vpack.c.b16 %v867, %v863
    %v1196 = vpack.c.b16 %v872, %v868
    %v1197 = vpack.c.b16 %v873, %v869
    %v1198 = vpack.c.b16 %v874, %v870
    %v1199 = vpack.c.b16 %v875, %v871
    %v1200 = vpack.c.b16 %v880, %v876
    %v1201 = vpack.c.b16 %v881, %v877
    %v1202 = vpack.c.b16 %v882, %v878
    %v1203 = vpack.c.b16 %v883, %v879
    %v1204 = vpack.c.b16 %v888, %v884
    %v1205 = vpack.c.b16 %v889, %v885
    %v1206 = vpack.c.b16 %v890, %v886
    %v1207 = vpack.c.b16 %v891, %v887
    %v1208 = vpack.c.b16 %v896, %v892
    %v1209 = vpack.c.b16 %v897, %v893
    %v1210 = vpack.c.b16 %v898, %v894
    %v1211 = vpack.c.b16 %v899, %v895
    %v1212 = vpack.c.b16 %v904, %v900
    %v1213 = vpack.c.b16 %v905, %v901
    %v1214 = vpack.c.b16 %v906, %v902
    %v1215 = vpack.c.b16 %v907, %v903
    %v1216 = vpack.c.b16 %v912, %v908
    %v1217 = vpack.c.b16 %v913, %v909
    %v1218 = vpack.c.b16 %v914, %v910
    %v1219 = vpack.c.b16 %v915, %v911
    %v1220 = vpack.c.b16 %v920, %v916
    %v1221 = vpack.c.b16 %v921, %v917
    %v1222 = vpack.c.b16 %v922, %v918
    %v1223 = vpack.c.b16 %v923, %v919
    %v1224 = vpack.c.b16 %v928, %v924
    %v1225 = vpack.c.b16 %v929, %v925
    %v1226 = vpack.c.b16 %v930, %v926
    %v1227 = vpack.c.b16 %v931, %v927
    %v1228 = vpack.c.b16 %v936, %v932
    %v1229 = vpack.c.b16 %v937, %v933
    %v1230 = vpack.c.b16 %v938, %v934
    %v1231 = vpack.c.b16 %v939, %v935
    %v1232 = vpack.c.b16 %v944, %v940
    %v1233 = vpack.c.b16 %v945, %v941
    %v1234 = vpack.c.b16 %v946, %v942
    %v1235 = vpack.c.b16 %v947, %v943
    %v1236 = vpack.c.b16 %v952, %v948
    %v1237 = vpack.c.b16 %v953, %v949
    %v1238 = vpack.c.b16 %v954, %v950
    %v1239 = vpack.c.b16 %v955, %v951
    %v1240 = vpack.c.b16 %v960, %v956
    %v1241 = vpack.c.b16 %v961, %v957
    %v1242 = vpack.c.b16 %v962, %v958
    %v1243 = vpack.c.b16 %v963, %v959
    %v1244 = vpack.c.b16 %v968, %v964
    %v1245 = vpack.c.b16 %v969, %v965
    %v1246 = vpack.c.b16 %v970, %v966
    %v1247 = vpack.c.b16 %v971, %v967
    %v1248 = vpack.c.b16 %v976, %v972
    %v1249 = vpack.c.b16 %v977, %v973
    %v1250 = vpack.c.b16 %v978, %v974
    %v1251 = vpack.c.b16 %v979, %v975
    %v1252 = vpack.c.b16 %v984, %v980
    %v1253 = vpack.c.b16 %v985, %v981
    %v1254 = vpack.c.b16 %v986, %v982
    %v1255 = vpack.c.b16 %v987, %v983
    %v1256 = vpack.c.b16 %v992, %v988
    %v1257 = vpack.c.b16 %v993, %v989
    %v1258 = vpack.c.b16 %v994, %v990
    %v1259 = vpack.c.b16 %v995, %v991
    %v1260 = vpack.c.b16 %v1000, %v996
    %v1261 = vpack.c.b16 %v1001, %v997
    %v1262 = vpack.c.b16 %v1002, %v998
    %v1263 = vpack.c.b16 %v1003, %v999
    %v1264 = vpack.c.b16 %v1008, %v1004
    %v1265 = vpack.c.b16 %v1009, %v1005
    %v1266 = vpack.c.b16 %v1010, %v1006
    %v1267 = vpack.c.b16 %v1011, %v1007
    %v1268 = vpack.c.b16 %v1016, %v1012
    %v1269 = vpack.c.b16 %v1017, %v1013
    %v1270 = vpack.c.b16 %v1018, %v1014
    %v1271 = vpack.c.b16 %v1019, %v1015
    %v1272 = vpack.c.b16 %v1024, %v1020
    %v1273 = vpack.c.b16 %v1025, %v1021
    %v1274 = vpack.c.b16 %v1026, %v1022
    %v1275 = vpack.c.b16 %v1027, %v1023
    %v1276 = vpack.c.b16 %v1032, %v1028
    %v1277 = vpack.c.b16 %v1033, %v1029
    %v1278 = vpack.c.b16 %v1034, %v1030
    %v1279 = vpack.c.b16 %v1035, %v1031
    %v1280 = vpack.c.b16 %v1040, %v1036
    %v1281 = vpack.c.b16 %v1041, %v1037
    %v1282 = vpack.c.b16 %v1042, %v1038
    %v1283 = vpack.c.b16 %v1043, %v1039
    %v1284 = vpack.c.b16 %v1048, %v1044
    %v1285 = vpack.c.b16 %v1049, %v1045
    %v1286 = vpack.c.b16 %v1050, %v1046
    %v1287 = vpack.c.b16 %v1051, %v1047
    %v1288 = vpack.c.b16 %v1056, %v1052
    %v1289 = vpack.c.b16 %v1057, %v1053
    %v1290 = vpack.c.b16 %v1058, %v1054
    %v1291 = vpack.c.b16 %v1059, %v1055
    %v1292 = vpack.c.b16 %v1064, %v1060
    %v1293 = vpack.c.b16 %v1065, %v1061
    %v1294 = vpack.c.b16 %v1066, %v1062
    %v1295 = vpack.c.b16 %v1067, %v1063
    %v1296 = vpack.c.b16 %v1072, %v1068
    %v1297 = vpack.c.b16 %v1073, %v1069
    %v1298 = vpack.c.b16 %v1074, %v1070
    %v1299 = vpack.c.b16 %v1075, %v1071
    %1524 = vmatprep.subr.bf16.mxu0 %v1077
    %1525 = vmatpush1.bf16.msra.mxu0 %v1076
    %1526 = vmatprep.subr.bf16.mxu0 %v1081
    %1527 = vmatpush1.bf16.msra.mxu0 %v1080
    %1528 = vmatprep.subr.bf16.mxu0 %v1085
    %1529 = vmatpush1.bf16.msra.mxu0 %v1084
    %1530 = vmatprep.subr.bf16.mxu0 %v1089
    %1531 = vmatpush1.bf16.msra.mxu0 %v1088
    %1532 = vmatprep.subr.bf16.mxu0 %v1093
    %1533 = vmatpush1.bf16.msra.mxu0 %v1092
    %1534 = vmatprep.subr.bf16.mxu0 %v1097
    %1535 = vmatpush1.bf16.msra.mxu0 %v1096
    %1536 = vmatprep.subr.bf16.mxu0 %v1101
    %1537 = vmatpush1.bf16.msra.mxu0 %v1100
    %1538 = vmatprep.subr.bf16.mxu0 %v1105
    %1539 = vmatpush1.bf16.msra.mxu0 %v1104
    %1540 = vmatprep.subr.bf16.mxu0 %v1109
    %1541 = vmatpush1.bf16.msra.mxu0 %v1108
    %1542 = vmatprep.subr.bf16.mxu0 %v1113
    %1543 = vmatpush1.bf16.msra.mxu0 %v1112
    %1544 = vmatprep.subr.bf16.mxu0 %v1117
    %1545 = vmatpush1.bf16.msra.mxu0 %v1116
    %1546 = vmatprep.subr.bf16.mxu0 %v1121
    %1547 = vmatpush1.bf16.msra.mxu0 %v1120
    %1548 = vmatprep.subr.bf16.mxu0 %v1125
    %1549 = vmatpush1.bf16.msra.mxu0 %v1124
    %1550 = vmatprep.subr.bf16.mxu0 %v1129
    %1551 = vmatpush1.bf16.msra.mxu0 %v1128
    %1552 = vmatprep.subr.bf16.mxu0 %v1133
    %1553 = vmatpush1.bf16.msra.mxu0 %v1132
    %1554 = vmatprep.subr.bf16.mxu0 %v1137
    %1555 = vmatpush1.bf16.msra.mxu0 %v1136
    %1556 = vmatprep.mubr.bf16.mxu0 %v391
    %1557 = vmatmul.mubr.bf16.gmra.mrb[0].mxu0 %v390
    %v1558 = vpop.f32.mrb[0].mxu0
    %v1559 = vadd.f32 %v351, %v1558
    %v1560 = vpop.f32.mrb[0].mxu0
    %v1561 = vadd.f32 %v355, %v1560
    %v1562 = vpop.f32.mrb[0].mxu0
    %v1563 = vadd.f32 %v351, %v1562
    %v1564 = vpop.f32.mrb[0].mxu0
    %v1565 = vadd.f32 %v355, %v1564
    %1566 = vdwg.mxu0
    %1567 = vmatprep.subr.bf16.mxu0 %v1141
    %1568 = vmatpush1.bf16.msra.mxu0 %v1140
    %1569 = vmatprep.subr.bf16.mxu0 %v1145
    %1570 = vmatpush1.bf16.msra.mxu0 %v1144
    %1571 = vmatprep.subr.bf16.mxu0 %v1149
    %1572 = vmatpush1.bf16.msra.mxu0 %v1148
    %1573 = vmatprep.subr.bf16.mxu0 %v1153
    %1574 = vmatpush1.bf16.msra.mxu0 %v1152
    %1575 = vmatprep.subr.bf16.mxu0 %v1157
    %1576 = vmatpush1.bf16.msra.mxu0 %v1156
    %1577 = vmatprep.subr.bf16.mxu0 %v1161
    %1578 = vmatpush1.bf16.msra.mxu0 %v1160
    %1579 = vmatprep.subr.bf16.mxu0 %v1165
    %1580 = vmatpush1.bf16.msra.mxu0 %v1164
    %1581 = vmatprep.subr.bf16.mxu0 %v1169
    %1582 = vmatpush1.bf16.msra.mxu0 %v1168
    %1583 = vmatprep.subr.bf16.mxu0 %v1173
    %1584 = vmatpush1.bf16.msra.mxu0 %v1172
    %1585 = vmatprep.subr.bf16.mxu0 %v1177
    %1586 = vmatpush1.bf16.msra.mxu0 %v1176
    %1587 = vmatprep.subr.bf16.mxu0 %v1181
    %1588 = vmatpush1.bf16.msra.mxu0 %v1180
    %1589 = vmatprep.subr.bf16.mxu0 %v1185
    %1590 = vmatpush1.bf16.msra.mxu0 %v1184
    %1591 = vmatprep.subr.bf16.mxu0 %v1189
    %1592 = vmatpush1.bf16.msra.mxu0 %v1188
    %1593 = vmatprep.subr.bf16.mxu0 %v1193
    %1594 = vmatpush1.bf16.msra.mxu0 %v1192
    %1595 = vmatprep.subr.bf16.mxu0 %v1197
    %1596 = vmatpush1.bf16.msra.mxu0 %v1196
    %1597 = vmatprep.subr.bf16.mxu0 %v1201
    %1598 = vmatpush1.bf16.msra.mxu0 %v1200
    %1599 = vmatprep.mubr.bf16.mxu0 %v393
    %1600 = vmatmul.mubr.bf16.gmra.mrb[0].mxu0 %v392
    %v1601 = vpop.f32.mrb[0].mxu0
    %v1602 = vadd.f32 %v1559, %v1601
    %v1603 = vpop.f32.mrb[0].mxu0
    %v1604 = vadd.f32 %v1561, %v1603
    %v1605 = vpop.f32.mrb[0].mxu0
    %v1606 = vadd.f32 %v1563, %v1605
    %v1607 = vpop.f32.mrb[0].mxu0
    %v1608 = vadd.f32 %v1565, %v1607
    %1609 = vdwg.mxu0
    %1610 = vmatprep.subr.bf16.mxu0 %v1205
    %1611 = vmatpush1.bf16.msra.mxu0 %v1204
    %1612 = vmatprep.subr.bf16.mxu0 %v1209
    %1613 = vmatpush1.bf16.msra.mxu0 %v1208
    %1614 = vmatprep.subr.bf16.mxu0 %v1213
    %1615 = vmatpush1.bf16.msra.mxu0 %v1212
    %1616 = vmatprep.subr.bf16.mxu0 %v1217
    %1617 = vmatpush1.bf16.msra.mxu0 %v1216
    %1618 = vmatprep.subr.bf16.mxu0 %v1221
    %1619 = vmatpush1.bf16.msra.mxu0 %v1220
    %1620 = vmatprep.subr.bf16.mxu0 %v1225
    %1621 = vmatpush1.bf16.msra.mxu0 %v1224
    %1622 = vmatprep.subr.bf16.mxu0 %v1229
    %1623 = vmatpush1.bf16.msra.mxu0 %v1228
    %1624 = vmatprep.subr.bf16.mxu0 %v1233
    %1625 = vmatpush1.bf16.msra.mxu0 %v1232
    %1626 = vmatprep.subr.bf16.mxu0 %v1237
    %1627 = vmatpush1.bf16.msra.mxu0 %v1236
    %1628 = vmatprep.subr.bf16.mxu0 %v1241
    %1629 = vmatpush1.bf16.msra.mxu0 %v1240
    %1630 = vmatprep.subr.bf16.mxu0 %v1245
    %1631 = vmatpush1.bf16.msra.mxu0 %v1244
    %1632 = vmatprep.subr.bf16.mxu0 %v1249
    %1633 = vmatpush1.bf16.msra.mxu0 %v1248
    %1634 = vmatprep.subr.bf16.mxu0 %v1253
    %1635 = vmatpush1.bf16.msra.mxu0 %v1252
    %1636 = vmatprep.subr.bf16.mxu0 %v1257
    %1637 = vmatpush1.bf16.msra.mxu0 %v1256
    %1638 = vmatprep.subr.bf16.mxu0 %v1261
    %1639 = vmatpush1.bf16.msra.mxu0 %v1260
    %1640 = vmatprep.subr.bf16.mxu0 %v1265
    %1641 = vmatpush1.bf16.msra.mxu0 %v1264
    %1642 = vmatprep.mubr.bf16.mxu0 %v395
    %1643 = vmatmul.mubr.bf16.gmra.mrb[0].mxu0 %v394
    %v1644 = vpop.f32.mrb[0].mxu0
    %v1645 = vadd.f32 %v1602, %v1644
    %v1646 = vpop.f32.mrb[0].mxu0
    %v1647 = vadd.f32 %v1604, %v1646
    %v1648 = vpop.f32.mrb[0].mxu0
    %v1649 = vadd.f32 %v1606, %v1648
    %v1650 = vpop.f32.mrb[0].mxu0
    %v1651 = vadd.f32 %v1608, %v1650
    %1652 = vdwg.mxu0
    %1653 = vmatprep.subr.bf16.mxu0 %v1269
    %1654 = vmatpush1.bf16.msra.mxu0 %v1268
    %1655 = vmatprep.subr.bf16.mxu0 %v1273
    %1656 = vmatpush1.bf16.msra.mxu0 %v1272
    %1657 = vmatprep.subr.bf16.mxu0 %v1277
    %1658 = vmatpush1.bf16.msra.mxu0 %v1276
    %1659 = vmatprep.subr.bf16.mxu0 %v1281
    %1660 = vmatpush1.bf16.msra.mxu0 %v1280
    %1661 = vmatprep.subr.bf16.mxu0 %v1285
    %1662 = vmatpush1.bf16.msra.mxu0 %v1284
    %1663 = vmatprep.subr.bf16.mxu0 %v1289
    %1664 = vmatpush1.bf16.msra.mxu0 %v1288
    %1665 = vmatprep.subr.bf16.mxu0 %v1293
    %1666 = vmatpush1.bf16.msra.mxu0 %v1292
    %1667 = vmatprep.subr.bf16.mxu0 %v1297
    %1668 = vmatpush1.bf16.msra.mxu0 %v1296
    %1669 = vmatprep.subr.bf16.mxu0 0
    %1670 = vmatpush1.bf16.msra.mxu0 0
    %1671 = vmatprep.subr.bf16.mxu0 0
    %1672 = vmatpush1.bf16.msra.mxu0 0
    %1673 = vmatprep.subr.bf16.mxu0 0
    %1674 = vmatpush1.bf16.msra.mxu0 0
    %1675 = vmatprep.subr.bf16.mxu0 0
    %1676 = vmatpush1.bf16.msra.mxu0 0
    %1677 = vmatprep.subr.bf16.mxu0 0
    %1678 = vmatpush1.bf16.msra.mxu0 0
    %1679 = vmatprep.subr.bf16.mxu0 0
    %1680 = vmatpush1.bf16.msra.mxu0 0
    %1681 = vmatprep.subr.bf16.mxu0 0
    %1682 = vmatpush1.bf16.msra.mxu0 0
    %1683 = vmatprep.subr.bf16.mxu0 0
    %1684 = vmatpush1.bf16.msra.mxu0 0
    %1685 = vmatprep.mubr.bf16.mxu0 0
    %1686 = vmatmul.mubr.bf16.gmra.mrb[0].mxu0 %v396
    %v1687 = vpop.f32.mrb[0].mxu0
    %v1688 = vadd.f32 %v1645, %v1687
    %v1689 = vpop.f32.mrb[0].mxu0
    %v1690 = vadd.f32 %v1647, %v1689
    %v1691 = vpop.f32.mrb[0].mxu0
    %v1692 = vadd.f32 %v1649, %v1691
    %v1693 = vpop.f32.mrb[0].mxu0
    %v1694 = vadd.f32 %v1651, %v1693
    %1695 = vdwg.mxu0
    %1696 = vmatprep.subr.bf16.mxu0 %v1079
    %1697 = vmatpush1.bf16.msra.mxu0 %v1078
    %1698 = vmatprep.subr.bf16.mxu0 %v1083
    %1699 = vmatpush1.bf16.msra.mxu0 %v1082
    %1700 = vmatprep.subr.bf16.mxu0 %v1087
    %1701 = vmatpush1.bf16.msra.mxu0 %v1086
    %1702 = vmatprep.subr.bf16.mxu0 %v1091
    %1703 = vmatpush1.bf16.msra.mxu0 %v1090
    %1704 = vmatprep.subr.bf16.mxu0 %v1095
    %1705 = vmatpush1.bf16.msra.mxu0 %v1094
    %1706 = vmatprep.subr.bf16.mxu0 %v1099
    %1707 = vmatpush1.bf16.msra.mxu0 %v1098
    %1708 = vmatprep.subr.bf16.mxu0 %v1103
    %1709 = vmatpush1.bf16.msra.mxu0 %v1102
    %1710 = vmatprep.subr.bf16.mxu0 %v1107
    %1711 = vmatpush1.bf16.msra.mxu0 %v1106
    %1712 = vmatprep.subr.bf16.mxu0 %v1111
    %1713 = vmatpush1.bf16.msra.mxu0 %v1110
    %1714 = vmatprep.subr.bf16.mxu0 %v1115
    %1715 = vmatpush1.bf16.msra.mxu0 %v1114
    %1716 = vmatprep.subr.bf16.mxu0 %v1119
    %1717 = vmatpush1.bf16.msra.mxu0 %v1118
    %1718 = vmatprep.subr.bf16.mxu0 %v1123
    %1719 = vmatpush1.bf16.msra.mxu0 %v1122
    %1720 = vmatprep.subr.bf16.mxu0 %v1127
    %1721 = vmatpush1.bf16.msra.mxu0 %v1126
    %1722 = vmatprep.subr.bf16.mxu0 %v1131
    %1723 = vmatpush1.bf16.msra.mxu0 %v1130
    %1724 = vmatprep.subr.bf16.mxu0 %v1135
    %1725 = vmatpush1.bf16.msra.mxu0 %v1134
    %1726 = vmatprep.subr.bf16.mxu0 %v1139
    %1727 = vmatpush1.bf16.msra.mxu0 %v1138
    %1728 = vmatprep.mubr.bf16.mxu0 %v391
    %1729 = vmatmul.mubr.bf16.gmra.mrb[0].mxu0 %v390
    %v1730 = vpop.f32.mrb[0].mxu0
    %v1731 = vadd.f32 %v359, %v1730
    %v1732 = vpop.f32.mrb[0].mxu0
    %v1733 = vadd.f32 %v363, %v1732
    %v1734 = vpop.f32.mrb[0].mxu0
    %v1735 = vadd.f32 %v359, %v1734
    %v1736 = vpop.f32.mrb[0].mxu0
    %v1737 = vadd.f32 %v363, %v1736
    %1738 = vdwg.mxu0
    %1739 = vmatprep.subr.bf16.mxu0 %v1143
    %1740 = vmatpush1.bf16.msra.mxu0 %v1142
    %1741 = vmatprep.subr.bf16.mxu0 %v1147
    %1742 = vmatpush1.bf16.msra.mxu0 %v1146
    %1743 = vmatprep.subr.bf16.mxu0 %v1151
    %1744 = vmatpush1.bf16.msra.mxu0 %v1150
    %1745 = vmatprep.subr.bf16.mxu0 %v1155
    %1746 = vmatpush1.bf16.msra.mxu0 %v1154
    %1747 = vmatprep.subr.bf16.mxu0 %v1159
    %1748 = vmatpush1.bf16.msra.mxu0 %v1158
    %1749 = vmatprep.subr.bf16.mxu0 %v1163
    %1750 = vmatpush1.bf16.msra.mxu0 %v1162
    %1751 = vmatprep.subr.bf16.mxu0 %v1167
    %1752 = vmatpush1.bf16.msra.mxu0 %v1166
    %1753 = vmatprep.subr.bf16.mxu0 %v1171
    %1754 = vmatpush1.bf16.msra.mxu0 %v1170
    %1755 = vmatprep.subr.bf16.mxu0 %v1175
    %1756 = vmatpush1.bf16.msra.mxu0 %v1174
    %1757 = vmatprep.subr.bf16.mxu0 %v1179
    %1758 = vmatpush1.bf16.msra.mxu0 %v1178
    %1759 = vmatprep.subr.bf16.mxu0 %v1183
    %1760 = vmatpush1.bf16.msra.mxu0 %v1182
    %1761 = vmatprep.subr.bf16.mxu0 %v1187
    %1762 = vmatpush1.bf16.msra.mxu0 %v1186
    %1763 = vmatprep.subr.bf16.mxu0 %v1191
    %1764 = vmatpush1.bf16.msra.mxu0 %v1190
    %1765 = vmatprep.subr.bf16.mxu0 %v1195
    %1766 = vmatpush1.bf16.msra.mxu0 %v1194
    %1767 = vmatprep.subr.bf16.mxu0 %v1199
    %1768 = vmatpush1.bf16.msra.mxu0 %v1198
    %1769 = vmatprep.subr.bf16.mxu0 %v1203
    %1770 = vmatpush1.bf16.msra.mxu0 %v1202
    %1771 = vmatprep.mubr.bf16.mxu0 %v393
    %1772 = vmatmul.mubr.bf16.gmra.mrb[0].mxu0 %v392
    %v1773 = vpop.f32.mrb[0].mxu0
    %v1774 = vadd.f32 %v1731, %v1773
    %v1775 = vpop.f32.mrb[0].mxu0
    %v1776 = vadd.f32 %v1733, %v1775
    %v1777 = vpop.f32.mrb[0].mxu0
    %v1778 = vadd.f32 %v1735, %v1777
    %v1779 = vpop.f32.mrb[0].mxu0
    %v1780 = vadd.f32 %v1737, %v1779
    %1781 = vdwg.mxu0
    %1782 = vmatprep.subr.bf16.mxu0 %v1207
    %1783 = vmatpush1.bf16.msra.mxu0 %v1206
    %1784 = vmatprep.subr.bf16.mxu0 %v1211
    %1785 = vmatpush1.bf16.msra.mxu0 %v1210
    %1786 = vmatprep.subr.bf16.mxu0 %v1215
    %1787 = vmatpush1.bf16.msra.mxu0 %v1214
    %1788 = vmatprep.subr.bf16.mxu0 %v1219
    %1789 = vmatpush1.bf16.msra.mxu0 %v1218
    %1790 = vmatprep.subr.bf16.mxu0 %v1223
    %1791 = vmatpush1.bf16.msra.mxu0 %v1222
    %1792 = vmatprep.subr.bf16.mxu0 %v1227
    %1793 = vmatpush1.bf16.msra.mxu0 %v1226
    %1794 = vmatprep.subr.bf16.mxu0 %v1231
    %1795 = vmatpush1.bf16.msra.mxu0 %v1230
    %1796 = vmatprep.subr.bf16.mxu0 %v1235
    %1797 = vmatpush1.bf16.msra.mxu0 %v1234
    %1798 = vmatprep.subr.bf16.mxu0 %v1239
    %1799 = vmatpush1.bf16.msra.mxu0 %v1238
    %1800 = vmatprep.subr.bf16.mxu0 %v1243
    %1801 = vmatpush1.bf16.msra.mxu0 %v1242
    %1802 = vmatprep.subr.bf16.mxu0 %v1247
    %1803 = vmatpush1.bf16.msra.mxu0 %v1246
    %1804 = vmatprep.subr.bf16.mxu0 %v1251
    %1805 = vmatpush1.bf16.msra.mxu0 %v1250
    %1806 = vmatprep.subr.bf16.mxu0 %v1255
    %1807 = vmatpush1.bf16.msra.mxu0 %v1254
    %1808 = vmatprep.subr.bf16.mxu0 %v1259
    %1809 = vmatpush1.bf16.msra.mxu0 %v1258
    %1810 = vmatprep.subr.bf16.mxu0 %v1263
    %1811 = vmatpush1.bf16.msra.mxu0 %v1262
    %1812 = vmatprep.subr.bf16.mxu0 %v1267
    %1813 = vmatpush1.bf16.msra.mxu0 %v1266
    %1814 = vmatprep.mubr.bf16.mxu0 %v395
    %1815 = vmatmul.mubr.bf16.gmra.mrb[0].mxu0 %v394
    %v1816 = vpop.f32.mrb[0].mxu0
    %v1817 = vadd.f32 %v1774, %v1816
    %v1818 = vpop.f32.mrb[0].mxu0
    %v1819 = vadd.f32 %v1776, %v1818
    %v1820 = vpop.f32.mrb[0].mxu0
    %v1821 = vadd.f32 %v1778, %v1820
    %v1822 = vpop.f32.mrb[0].mxu0
    %v1823 = vadd.f32 %v1780, %v1822
    %1824 = vdwg.mxu0
    %1825 = vmatprep.subr.bf16.mxu0 %v1271
    %1826 = vmatpush1.bf16.msra.mxu0 %v1270
    %1827 = vmatprep.subr.bf16.mxu0 %v1275
    %1828 = vmatpush1.bf16.msra.mxu0 %v1274
    %1829 = vmatprep.subr.bf16.mxu0 %v1279
    %1830 = vmatpush1.bf16.msra.mxu0 %v1278
    %1831 = vmatprep.subr.bf16.mxu0 %v1283
    %1832 = vmatpush1.bf16.msra.mxu0 %v1282
    %1833 = vmatprep.subr.bf16.mxu0 %v1287
    %1834 = vmatpush1.bf16.msra.mxu0 %v1286
    %1835 = vmatprep.subr.bf16.mxu0 %v1291
    %1836 = vmatpush1.bf16.msra.mxu0 %v1290
    %1837 = vmatprep.subr.bf16.mxu0 %v1295
    %1838 = vmatpush1.bf16.msra.mxu0 %v1294
    %1839 = vmatprep.subr.bf16.mxu0 %v1299
    %1840 = vmatpush1.bf16.msra.mxu0 %v1298
    %1841 = vmatprep.subr.bf16.mxu0 0
    %1842 = vmatpush1.bf16.msra.mxu0 0
    %1843 = vmatprep.subr.bf16.mxu0 0
    %1844 = vmatpush1.bf16.msra.mxu0 0
    %1845 = vmatprep.subr.bf16.mxu0 0
    %1846 = vmatpush1.bf16.msra.mxu0 0
    %1847 = vmatprep.subr.bf16.mxu0 0
    %1848 = vmatpush1.bf16.msra.mxu0 0
    %1849 = vmatprep.subr.bf16.mxu0 0
    %1850 = vmatpush1.bf16.msra.mxu0 0
    %1851 = vmatprep.subr.bf16.mxu0 0
    %1852 = vmatpush1.bf16.msra.mxu0 0
    %1853 = vmatprep.subr.bf16.mxu0 0
    %1854 = vmatpush1.bf16.msra.mxu0 0
    %1855 = vmatprep.subr.bf16.mxu0 0
    %1856 = vmatpush1.bf16.msra.mxu0 0
    %1857 = vmatprep.mubr.bf16.mxu0 0
    %1858 = vmatmul.mubr.bf16.gmra.mrb[0].mxu0 %v396
    %v1859 = vpop.f32.mrb[0].mxu0
    %v1860 = vadd.f32 %v1817, %v1859
    %v1861 = vpop.f32.mrb[0].mxu0
    %v1862 = vadd.f32 %v1819, %v1861
    %v1863 = vpop.f32.mrb[0].mxu0
    %v1864 = vadd.f32 %v1821, %v1863
    %v1865 = vpop.f32.mrb[0].mxu0
    %v1866 = vadd.f32 %v1823, %v1865
    %1867 = vdwg.mxu0
    %v1868 = vmax.f32 %v1688, 0.0
    %v1869 = vmax.f32 %v1690, 0.0
    %v1870 = vmax.f32 %v1860, 0.0
    %v1871 = vmax.f32 %v1862, 0.0
    %v1872 = vmax.f32 %v1692, 0.0
    %v1873 = vmax.f32 %v1694, 0.0
    %v1874 = vmax.f32 %v1864, 0.0
    %v1875 = vmax.f32 %v1866, 0.0
    %v1876 = vpack.c.bf16 %v1872, %v1868
    %v1877 = vpack.c.bf16 %v1873, %v1869
    %v1878 = vpack.c.bf16 %v1874, %v1870
    %v1879 = vpack.c.bf16 %v1875, %v1871
    %v1880 = vld [vmem:[#allocation8] sm:$0xff]
    %v1881 = vld [vmem:[#allocation8 + $0x8] sm:$0xff]
    %v1882 = vld [vmem:[#allocation8 + $0x10] sm:$0xff]
    %v1883 = vld [vmem:[#allocation8 + $0x18] sm:$0xff]
    %v1884 = vld [vmem:[#allocation8 + $0x20] sm:$0xff]
    %v1885 = vld [vmem:[#allocation8 + $0x28] sm:$0xff]
    %v1886 = vld [vmem:[#allocation8 + $0x30] sm:$0xff]
    %v1887 = vld [vmem:[#allocation8 + $0x38] sm:$0xff]
    %v1888 = vld [vmem:[#allocation8 + $0x40] sm:$0xff]
    %v1889 = vld [vmem:[#allocation8 + $0x48] sm:$0xff]
    %v1890 = vld [vmem:[#allocation8 + $0x50] sm:$0xff]
    %v1891 = vld [vmem:[#allocation8 + $0x58] sm:$0xff]
    %v1892 = vld [vmem:[#allocation8 + $0x60] sm:$0xff]
    %v1893 = vld [vmem:[#allocation8 + $0x68] sm:$0xff]
    %v1894 = vld [vmem:[#allocation8 + $0x70] sm:$0xff]
    %v1895 = vld [vmem:[#allocation8 + $0x78] sm:$0xff]
    %v1896 = vld [vmem:[#allocation8 + $0x80] sm:$0xff]
    %v1897 = vld [vmem:[#allocation8 + $0x88] sm:$0xff]
    %v1898 = vld [vmem:[#allocation8 + $0x90] sm:$0xff]
    %v1899 = vld [vmem:[#allocation8 + $0x98] sm:$0xff]
    %v1900 = vld [vmem:[#allocation8 + $0xa0] sm:$0xff]
    %v1901 = vld [vmem:[#allocation8 + $0xa8] sm:$0xff]
    %v1902 = vld [vmem:[#allocation8 + $0xb0] sm:$0xff]
    %v1903 = vld [vmem:[#allocation8 + $0xb8] sm:$0xff]
    %v1904 = vld [vmem:[#allocation8 + $0xc0] sm:$0xff]
    %v1905 = vld [vmem:[#allocation8 + $0xc8] sm:$0xff]
    %v1906 = vld [vmem:[#allocation8 + $0xd0] sm:$0xff]
    %v1907 = vld [vmem:[#allocation8 + $0xd8] sm:$0xff]
    %v1908 = vld [vmem:[#allocation8 + $0xe0] sm:$0xff]
    %v1909 = vld [vmem:[#allocation8 + $0xe8] sm:$0xff]
    %v1910 = vld [vmem:[#allocation8 + $0xf0] sm:$0xff]
    %v1911 = vld [vmem:[#allocation8 + $0xf8] sm:$0xff]
    %v1912 = vld [vmem:[#allocation8 + $0x100] sm:$0xff]
    %v1913 = vld [vmem:[#allocation8 + $0x108] sm:$0xff]
    %v1914 = vld [vmem:[#allocation8 + $0x110] sm:$0xff]
    %v1915 = vld [vmem:[#allocation8 + $0x118] sm:$0xff]
    %v1916 = vld [vmem:[#allocation8 + $0x120] sm:$0xff]
    %v1917 = vld [vmem:[#allocation8 + $0x128] sm:$0xff]
    %v1918 = vld [vmem:[#allocation8 + $0x130] sm:$0xff]
    %v1919 = vld [vmem:[#allocation8 + $0x138] sm:$0xff]
    %v1920 = vld [vmem:[#allocation8 + $0x140] sm:$0xff]
    %v1921 = vld [vmem:[#allocation8 + $0x148] sm:$0xff]
    %v1922 = vld [vmem:[#allocation8 + $0x150] sm:$0xff]
    %v1923 = vld [vmem:[#allocation8 + $0x158] sm:$0xff]
    %v1924 = vld [vmem:[#allocation8 + $0x160] sm:$0xff]
    %v1925 = vld [vmem:[#allocation8 + $0x168] sm:$0xff]
    %v1926 = vld [vmem:[#allocation8 + $0x170] sm:$0xff]
    %v1927 = vld [vmem:[#allocation8 + $0x178] sm:$0xff]
    %v1928 = vld [vmem:[#allocation8 + $0x180] sm:$0xff]
    %v1929 = vld [vmem:[#allocation8 + $0x188] sm:$0xff]
    %v1930 = vld [vmem:[#allocation8 + $0x190] sm:$0xff]
    %v1931 = vld [vmem:[#allocation8 + $0x198] sm:$0xff]
    %v1932 = vld [vmem:[#allocation8 + $0x1a0] sm:$0xff]
    %v1933 = vld [vmem:[#allocation8 + $0x1a8] sm:$0xff]
    %v1934 = vld [vmem:[#allocation8 + $0x1b0] sm:$0xff]
    %v1935 = vld [vmem:[#allocation8 + $0x1b8] sm:$0xff]
    %v1936 = vld [vmem:[#allocation8 + $0x1c0] sm:$0xff]
    %v1937 = vld [vmem:[#allocation8 + $0x1c8] sm:$0xff]
    %v1938 = vld [vmem:[#allocation8 + $0x1d0] sm:$0xff]
    %v1939 = vld [vmem:[#allocation8 + $0x1d8] sm:$0xff]
    %v1940 = vld [vmem:[#allocation8 + $0x1e0] sm:$0xff]
    %v1941 = vld [vmem:[#allocation8 + $0x1e8] sm:$0xff]
    %v1942 = vld [vmem:[#allocation8 + $0x1f0] sm:$0xff]
    %v1943 = vld [vmem:[#allocation8 + $0x1f8] sm:$0xff]
    %v1944 = vld [vmem:[%s4] sm:$0x3]
    %v1946 = vlaneseq
    %v1947 = vshrl.u32 %v1946, 7
    %v1948 = vsub.s32 0, %v1947
    %v1949 = vrot.slane %v1944, %v1948
    %v1950 = vlaneseq
    %v1951 = vshrl.u32 %v1950, 7
    %v1952 = vsub.s32 1, %v1951
    %v1953 = vrot.slane %v1944, %v1952
    %v2020 = vunpack.c.l.b16 %v1880
    %v2021 = vunpack.c.h.b16 %v1880
    %v2022 = vunpack.c.l.b16 %v1881
    %v2023 = vunpack.c.h.b16 %v1881
    %v2024 = vunpack.c.l.b16 %v1882
    %v2025 = vunpack.c.h.b16 %v1882
    %v2026 = vunpack.c.l.b16 %v1883
    %v2027 = vunpack.c.h.b16 %v1883
    %v2028 = vunpack.c.l.b16 %v1884
    %v2029 = vunpack.c.h.b16 %v1884
    %v2030 = vunpack.c.l.b16 %v1885
    %v2031 = vunpack.c.h.b16 %v1885
    %v2032 = vunpack.c.l.b16 %v1886
    %v2033 = vunpack.c.h.b16 %v1886
    %v2034 = vunpack.c.l.b16 %v1887
    %v2035 = vunpack.c.h.b16 %v1887
    %v2036 = vunpack.c.l.b16 %v1888
    %v2037 = vunpack.c.h.b16 %v1888
    %v2038 = vunpack.c.l.b16 %v1889
    %v2039 = vunpack.c.h.b16 %v1889
    %v2040 = vunpack.c.l.b16 %v1890
    %v2041 = vunpack.c.h.b16 %v1890
    %v2042 = vunpack.c.l.b16 %v1891
    %v2043 = vunpack.c.h.b16 %v1891
    %v2044 = vunpack.c.l.b16 %v1892
    %v2045 = vunpack.c.h.b16 %v1892
    %v2046 = vunpack.c.l.b16 %v1893
    %v2047 = vunpack.c.h.b16 %v1893
    %v2048 = vunpack.c.l.b16 %v1894
    %v2049 = vunpack.c.h.b16 %v1894
    %v2050 = vunpack.c.l.b16 %v1895
    %v2051 = vunpack.c.h.b16 %v1895
    %v2052 = vunpack.c.l.b16 %v1896
    %v2053 = vunpack.c.h.b16 %v1896
    %v2054 = vunpack.c.l.b16 %v1897
    %v2055 = vunpack.c.h.b16 %v1897
    %v2056 = vunpack.c.l.b16 %v1898
    %v2057 = vunpack.c.h.b16 %v1898
    %v2058 = vunpack.c.l.b16 %v1899
    %v2059 = vunpack.c.h.b16 %v1899
    %v2060 = vunpack.c.l.b16 %v1900
    %v2061 = vunpack.c.h.b16 %v1900
    %v2062 = vunpack.c.l.b16 %v1901
    %v2063 = vunpack.c.h.b16 %v1901
    %v2064 = vunpack.c.l.b16 %v1902
    %v2065 = vunpack.c.h.b16 %v1902
    %v2066 = vunpack.c.l.b16 %v1903
    %v2067 = vunpack.c.h.b16 %v1903
    %v2068 = vunpack.c.l.b16 %v1904
    %v2069 = vunpack.c.h.b16 %v1904
    %v2070 = vunpack.c.l.b16 %v1905
    %v2071 = vunpack.c.h.b16 %v1905
    %v2072 = vunpack.c.l.b16 %v1906
    %v2073 = vunpack.c.h.b16 %v1906
    %v2074 = vunpack.c.l.b16 %v1907
    %v2075 = vunpack.c.h.b16 %v1907
    %v2076 = vunpack.c.l.b16 %v1908
    %v2077 = vunpack.c.h.b16 %v1908
    %v2078 = vunpack.c.l.b16 %v1909
    %v2079 = vunpack.c.h.b16 %v1909
    %v2080 = vunpack.c.l.b16 %v1910
    %v2081 = vunpack.c.h.b16 %v1910
    %v2082 = vunpack.c.l.b16 %v1911
    %v2083 = vunpack.c.h.b16 %v1911
    %v2084 = vunpack.c.l.b16 %v1912
    %v2085 = vunpack.c.h.b16 %v1912
    %v2086 = vunpack.c.l.b16 %v1913
    %v2087 = vunpack.c.h.b16 %v1913
    %v2088 = vunpack.c.l.b16 %v1914
    %v2089 = vunpack.c.h.b16 %v1914
    %v2090 = vunpack.c.l.b16 %v1915
    %v2091 = vunpack.c.h.b16 %v1915
    %v2092 = vunpack.c.l.b16 %v1916
    %v2093 = vunpack.c.h.b16 %v1916
    %v2094 = vunpack.c.l.b16 %v1917
    %v2095 = vunpack.c.h.b16 %v1917
    %v2096 = vunpack.c.l.b16 %v1918
    %v2097 = vunpack.c.h.b16 %v1918
    %v2098 = vunpack.c.l.b16 %v1919
    %v2099 = vunpack.c.h.b16 %v1919
    %v2100 = vunpack.c.l.b16 %v1920
    %v2101 = vunpack.c.h.b16 %v1920
    %v2102 = vunpack.c.l.b16 %v1921
    %v2103 = vunpack.c.h.b16 %v1921
    %v2104 = vunpack.c.l.b16 %v1922
    %v2105 = vunpack.c.h.b16 %v1922
    %v2106 = vunpack.c.l.b16 %v1923
    %v2107 = vunpack.c.h.b16 %v1923
    %v2108 = vunpack.c.l.b16 %v1924
    %v2109 = vunpack.c.h.b16 %v1924
    %v2110 = vunpack.c.l.b16 %v1925
    %v2111 = vunpack.c.h.b16 %v1925
    %v2112 = vunpack.c.l.b16 %v1926
    %v2113 = vunpack.c.h.b16 %v1926
    %v2114 = vunpack.c.l.b16 %v1927
    %v2115 = vunpack.c.h.b16 %v1927
    %v2116 = vunpack.c.l.b16 %v1928
    %v2117 = vunpack.c.h.b16 %v1928
    %v2118 = vunpack.c.l.b16 %v1929
    %v2119 = vunpack.c.h.b16 %v1929
    %v2120 = vunpack.c.l.b16 %v1930
    %v2121 = vunpack.c.h.b16 %v1930
    %v2122 = vunpack.c.l.b16 %v1931
    %v2123 = vunpack.c.h.b16 %v1931
    %v2124 = vunpack.c.l.b16 %v1932
    %v2125 = vunpack.c.h.b16 %v1932
    %v2126 = vunpack.c.l.b16 %v1933
    %v2127 = vunpack.c.h.b16 %v1933
    %v2128 = vunpack.c.l.b16 %v1934
    %v2129 = vunpack.c.h.b16 %v1934
    %v2130 = vunpack.c.l.b16 %v1935
    %v2131 = vunpack.c.h.b16 %v1935
    %v2132 = vunpack.c.l.b16 %v1936
    %v2133 = vunpack.c.h.b16 %v1936
    %v2134 = vunpack.c.l.b16 %v1937
    %v2135 = vunpack.c.h.b16 %v1937
    %v2136 = vunpack.c.l.b16 %v1938
    %v2137 = vunpack.c.h.b16 %v1938
    %v2138 = vunpack.c.l.b16 %v1939
    %v2139 = vunpack.c.h.b16 %v1939
    %v2140 = vunpack.c.l.b16 %v1940
    %v2141 = vunpack.c.h.b16 %v1940
    %v2142 = vunpack.c.l.b16 %v1941
    %v2143 = vunpack.c.h.b16 %v1941
    %v2144 = vunpack.c.l.b16 %v1942
    %v2145 = vunpack.c.h.b16 %v1942
    %v2146 = vunpack.c.l.b16 %v1943
    %v2147 = vunpack.c.h.b16 %v1943
    %v2148 = vpack.c.b16 %v2022, %v2020
    %v2149 = vpack.c.b16 %v2023, %v2021
    %v2150 = vpack.c.b16 %v2026, %v2024
    %v2151 = vpack.c.b16 %v2027, %v2025
    %v2152 = vpack.c.b16 %v2030, %v2028
    %v2153 = vpack.c.b16 %v2031, %v2029
    %v2154 = vpack.c.b16 %v2034, %v2032
    %v2155 = vpack.c.b16 %v2035, %v2033
    %v2156 = vpack.c.b16 %v2038, %v2036
    %v2157 = vpack.c.b16 %v2039, %v2037
    %v2158 = vpack.c.b16 %v2042, %v2040
    %v2159 = vpack.c.b16 %v2043, %v2041
    %v2160 = vpack.c.b16 %v2046, %v2044
    %v2161 = vpack.c.b16 %v2047, %v2045
    %v2162 = vpack.c.b16 %v2050, %v2048
    %v2163 = vpack.c.b16 %v2051, %v2049
    %v2164 = vpack.c.b16 %v2054, %v2052
    %v2165 = vpack.c.b16 %v2055, %v2053
    %v2166 = vpack.c.b16 %v2058, %v2056
    %v2167 = vpack.c.b16 %v2059, %v2057
    %v2168 = vpack.c.b16 %v2062, %v2060
    %v2169 = vpack.c.b16 %v2063, %v2061
    %v2170 = vpack.c.b16 %v2066, %v2064
    %v2171 = vpack.c.b16 %v2067, %v2065
    %v2172 = vpack.c.b16 %v2070, %v2068
    %v2173 = vpack.c.b16 %v2071, %v2069
    %v2174 = vpack.c.b16 %v2074, %v2072
    %v2175 = vpack.c.b16 %v2075, %v2073
    %v2176 = vpack.c.b16 %v2078, %v2076
    %v2177 = vpack.c.b16 %v2079, %v2077
    %v2178 = vpack.c.b16 %v2082, %v2080
    %v2179 = vpack.c.b16 %v2083, %v2081
    %v2180 = vpack.c.b16 %v2086, %v2084
    %v2181 = vpack.c.b16 %v2087, %v2085
    %v2182 = vpack.c.b16 %v2090, %v2088
    %v2183 = vpack.c.b16 %v2091, %v2089
    %v2184 = vpack.c.b16 %v2094, %v2092
    %v2185 = vpack.c.b16 %v2095, %v2093
    %v2186 = vpack.c.b16 %v2098, %v2096
    %v2187 = vpack.c.b16 %v2099, %v2097
    %v2188 = vpack.c.b16 %v2102, %v2100
    %v2189 = vpack.c.b16 %v2103, %v2101
    %v2190 = vpack.c.b16 %v2106, %v2104
    %v2191 = vpack.c.b16 %v2107, %v2105
    %v2192 = vpack.c.b16 %v2110, %v2108
    %v2193 = vpack.c.b16 %v2111, %v2109
    %v2194 = vpack.c.b16 %v2114, %v2112
    %v2195 = vpack.c.b16 %v2115, %v2113
    %v2196 = vpack.c.b16 %v2118, %v2116
    %v2197 = vpack.c.b16 %v2119, %v2117
    %v2198 = vpack.c.b16 %v2122, %v2120
    %v2199 = vpack.c.b16 %v2123, %v2121
    %v2200 = vpack.c.b16 %v2126, %v2124
    %v2201 = vpack.c.b16 %v2127, %v2125
    %v2202 = vpack.c.b16 %v2130, %v2128
    %v2203 = vpack.c.b16 %v2131, %v2129
    %v2204 = vpack.c.b16 %v2134, %v2132
    %v2205 = vpack.c.b16 %v2135, %v2133
    %v2206 = vpack.c.b16 %v2138, %v2136
    %v2207 = vpack.c.b16 %v2139, %v2137
    %v2208 = vpack.c.b16 %v2142, %v2140
    %v2209 = vpack.c.b16 %v2143, %v2141
    %v2210 = vpack.c.b16 %v2146, %v2144
    %v2211 = vpack.c.b16 %v2147, %v2145
    %2276 = vmatprep.subr.bf16.mxu0 %v2149
    %2277 = vmatpush1.bf16.msra.mxu0 %v2148
    %2278 = vmatprep.subr.bf16.mxu0 %v2151
    %2279 = vmatpush1.bf16.msra.mxu0 %v2150
    %2280 = vmatprep.subr.bf16.mxu0 %v2153
    %2281 = vmatpush1.bf16.msra.mxu0 %v2152
    %2282 = vmatprep.subr.bf16.mxu0 %v2155
    %2283 = vmatpush1.bf16.msra.mxu0 %v2154
    %2284 = vmatprep.subr.bf16.mxu0 %v2157
    %2285 = vmatpush1.bf16.msra.mxu0 %v2156
    %2286 = vmatprep.subr.bf16.mxu0 %v2159
    %2287 = vmatpush1.bf16.msra.mxu0 %v2158
    %2288 = vmatprep.subr.bf16.mxu0 %v2161
    %2289 = vmatpush1.bf16.msra.mxu0 %v2160
    %2290 = vmatprep.subr.bf16.mxu0 %v2163
    %2291 = vmatpush1.bf16.msra.mxu0 %v2162
    %2292 = vmatprep.subr.bf16.mxu0 %v2165
    %2293 = vmatpush1.bf16.msra.mxu0 %v2164
    %2294 = vmatprep.subr.bf16.mxu0 %v2167
    %2295 = vmatpush1.bf16.msra.mxu0 %v2166
    %2296 = vmatprep.subr.bf16.mxu0 %v2169
    %2297 = vmatpush1.bf16.msra.mxu0 %v2168
    %2298 = vmatprep.subr.bf16.mxu0 %v2171
    %2299 = vmatpush1.bf16.msra.mxu0 %v2170
    %2300 = vmatprep.subr.bf16.mxu0 %v2173
    %2301 = vmatpush1.bf16.msra.mxu0 %v2172
    %2302 = vmatprep.subr.bf16.mxu0 %v2175
    %2303 = vmatpush1.bf16.msra.mxu0 %v2174
    %2304 = vmatprep.subr.bf16.mxu0 %v2177
    %2305 = vmatpush1.bf16.msra.mxu0 %v2176
    %2306 = vmatprep.subr.bf16.mxu0 %v2179
    %2307 = vmatpush1.bf16.msra.mxu0 %v2178
    %2308 = vmatprep.mubr.bf16.mxu0 %v1877
    %2309 = vmatmul.mubr.bf16.gmra.mrb[0].mxu0 %v1876
    %v2310 = vpop.f32.mrb[0].mxu0
    %v2311 = vadd.f32 %v1949, %v2310
    %v2312 = vpop.f32.mrb[0].mxu0
    %v2313 = vadd.f32 %v1953, %v2312
    %v2314 = vpop.f32.mrb[0].mxu0
    %v2315 = vadd.f32 %v1949, %v2314
    %v2316 = vpop.f32.mrb[0].mxu0
    %v2317 = vadd.f32 %v1953, %v2316
    %2318 = vdwg.mxu0
    %2319 = vmatprep.subr.bf16.mxu0 %v2181
    %2320 = vmatpush1.bf16.msra.mxu0 %v2180
    %2321 = vmatprep.subr.bf16.mxu0 %v2183
    %2322 = vmatpush1.bf16.msra.mxu0 %v2182
    %2323 = vmatprep.subr.bf16.mxu0 %v2185
    %2324 = vmatpush1.bf16.msra.mxu0 %v2184
    %2325 = vmatprep.subr.bf16.mxu0 %v2187
    %2326 = vmatpush1.bf16.msra.mxu0 %v2186
    %2327 = vmatprep.subr.bf16.mxu0 %v2189
    %2328 = vmatpush1.bf16.msra.mxu0 %v2188
    %2329 = vmatprep.subr.bf16.mxu0 %v2191
    %2330 = vmatpush1.bf16.msra.mxu0 %v2190
    %2331 = vmatprep.subr.bf16.mxu0 %v2193
    %2332 = vmatpush1.bf16.msra.mxu0 %v2192
    %2333 = vmatprep.subr.bf16.mxu0 %v2195
    %2334 = vmatpush1.bf16.msra.mxu0 %v2194
    %2335 = vmatprep.subr.bf16.mxu0 %v2197
    %2336 = vmatpush1.bf16.msra.mxu0 %v2196
    %2337 = vmatprep.subr.bf16.mxu0 %v2199
    %2338 = vmatpush1.bf16.msra.mxu0 %v2198
    %2339 = vmatprep.subr.bf16.mxu0 %v2201
    %2340 = vmatpush1.bf16.msra.mxu0 %v2200
    %2341 = vmatprep.subr.bf16.mxu0 %v2203
    %2342 = vmatpush1.bf16.msra.mxu0 %v2202
    %2343 = vmatprep.subr.bf16.mxu0 %v2205
    %2344 = vmatpush1.bf16.msra.mxu0 %v2204
    %2345 = vmatprep.subr.bf16.mxu0 %v2207
    %2346 = vmatpush1.bf16.msra.mxu0 %v2206
    %2347 = vmatprep.subr.bf16.mxu0 %v2209
    %2348 = vmatpush1.bf16.msra.mxu0 %v2208
    %2349 = vmatprep.subr.bf16.mxu0 %v2211
    %2350 = vmatpush1.bf16.msra.mxu0 %v2210
    %2351 = vmatprep.mubr.bf16.mxu0 %v1879
    %2352 = vmatmul.mubr.bf16.gmra.mrb[0].mxu0 %v1878
    %v2353 = vpop.f32.mrb[0].mxu0
    %v2354 = vadd.f32 %v2311, %v2353
    %v2355 = vpop.f32.mrb[0].mxu0
    %v2356 = vadd.f32 %v2313, %v2355
    %v2357 = vpop.f32.mrb[0].mxu0
    %v2358 = vadd.f32 %v2315, %v2357
    %v2359 = vpop.f32.mrb[0].mxu0
    %v2360 = vadd.f32 %v2317, %v2359
    %2361 = vdwg.mxu0
    %v2362 = vmax.f32 %v2354, 0.0
    %v2363 = vmax.f32 %v2356, 0.0
    %v2364 = vmax.f32 %v2358, 0.0
    %v2365 = vmax.f32 %v2360, 0.0
    %v2366 = vpack.c.bf16 %v2364, %v2362
    %v2367 = vpack.c.bf16 %v2365, %v2363
    %v2368 = vld [vmem:[#allocation10] sm:$0xf]
    %v2369 = vld [vmem:[#allocation10 + $0x4] sm:$0xf]
    %v2370 = vld [vmem:[#allocation10 + $0x8] sm:$0xf]
    %v2371 = vld [vmem:[#allocation10 + $0xc] sm:$0xf]
    %v2372 = vld [vmem:[#allocation10 + $0x10] sm:$0xf]
    %v2373 = vld [vmem:[#allocation10 + $0x14] sm:$0xf]
    %v2374 = vld [vmem:[#allocation10 + $0x18] sm:$0xf]
    %v2375 = vld [vmem:[#allocation10 + $0x1c] sm:$0xf]
    %v2376 = vld [vmem:[#allocation10 + $0x20] sm:$0xf]
    %v2377 = vld [vmem:[#allocation10 + $0x24] sm:$0xf]
    %v2378 = vld [vmem:[#allocation10 + $0x28] sm:$0xf]
    %v2379 = vld [vmem:[#allocation10 + $0x2c] sm:$0xf]
    %v2380 = vld [vmem:[#allocation10 + $0x30] sm:$0xf]
    %v2381 = vld [vmem:[#allocation10 + $0x34] sm:$0xf]
    %v2382 = vld [vmem:[#allocation10 + $0x38] sm:$0xf]
    %v2383 = vld [vmem:[#allocation10 + $0x3c] sm:$0xf]
    %v2384 = vld [vmem:[#allocation10 + $0x40] sm:$0xf]
    %v2385 = vld [vmem:[#allocation10 + $0x44] sm:$0xf]
    %v2386 = vld [vmem:[#allocation10 + $0x48] sm:$0xf]
    %v2387 = vld [vmem:[#allocation10 + $0x4c] sm:$0xf]
    %v2388 = vld [vmem:[#allocation10 + $0x50] sm:$0xf]
    %v2389 = vld [vmem:[#allocation10 + $0x54] sm:$0xf]
    %v2390 = vld [vmem:[#allocation10 + $0x58] sm:$0xf]
    %v2391 = vld [vmem:[#allocation10 + $0x5c] sm:$0xf]
    %v2392 = vld [vmem:[#allocation10 + $0x60] sm:$0xf]
    %v2393 = vld [vmem:[#allocation10 + $0x64] sm:$0xf]
    %v2394 = vld [vmem:[#allocation10 + $0x68] sm:$0xf]
    %v2395 = vld [vmem:[#allocation10 + $0x6c] sm:$0xf]
    %v2396 = vld [vmem:[#allocation10 + $0x70] sm:$0xf]
    %v2397 = vld [vmem:[#allocation10 + $0x74] sm:$0xf]
    %v2398 = vld [vmem:[#allocation10 + $0x78] sm:$0xf]
    %v2399 = vld [vmem:[#allocation10 + $0x7c] sm:$0xf]
    %v2400 = vld [vmem:[%s6] sm:$0x1]
    %v2402 = vlaneseq
    %v2403 = vshrl.u32 %v2402, 7
    %v2404 = vsub.s32 0, %v2403
    %v2405 = vrot.slane %v2400, %v2404
    %v2439 = vunpack.c.l.b16 %v2368
    %v2440 = vunpack.c.l.b16 %v2369
    %v2441 = vunpack.c.l.b16 %v2370
    %v2442 = vunpack.c.l.b16 %v2371
    %v2443 = vunpack.c.l.b16 %v2372
    %v2444 = vunpack.c.l.b16 %v2373
    %v2445 = vunpack.c.l.b16 %v2374
    %v2446 = vunpack.c.l.b16 %v2375
    %v2447 = vunpack.c.l.b16 %v2376
    %v2448 = vunpack.c.l.b16 %v2377
    %v2449 = vunpack.c.l.b16 %v2378
    %v2450 = vunpack.c.l.b16 %v2379
    %v2451 = vunpack.c.l.b16 %v2380
    %v2452 = vunpack.c.l.b16 %v2381
    %v2453 = vunpack.c.l.b16 %v2382
    %v2454 = vunpack.c.l.b16 %v2383
    %v2455 = vunpack.c.l.b16 %v2384
    %v2456 = vunpack.c.l.b16 %v2385
    %v2457 = vunpack.c.l.b16 %v2386
    %v2458 = vunpack.c.l.b16 %v2387
    %v2459 = vunpack.c.l.b16 %v2388
    %v2460 = vunpack.c.l.b16 %v2389
    %v2461 = vunpack.c.l.b16 %v2390
    %v2462 = vunpack.c.l.b16 %v2391
    %v2463 = vunpack.c.l.b16 %v2392
    %v2464 = vunpack.c.l.b16 %v2393
    %v2465 = vunpack.c.l.b16 %v2394
    %v2466 = vunpack.c.l.b16 %v2395
    %v2467 = vunpack.c.l.b16 %v2396
    %v2468 = vunpack.c.l.b16 %v2397
    %v2469 = vunpack.c.l.b16 %v2398
    %v2470 = vunpack.c.l.b16 %v2399
    %v2471 = vpack.c.b16 %v2440, %v2439
    %v2472 = vpack.c.b16 %v2442, %v2441
    %v2473 = vpack.c.b16 %v2444, %v2443
    %v2474 = vpack.c.b16 %v2446, %v2445
    %v2475 = vpack.c.b16 %v2448, %v2447
    %v2476 = vpack.c.b16 %v2450, %v2449
    %v2477 = vpack.c.b16 %v2452, %v2451
    %v2478 = vpack.c.b16 %v2454, %v2453
    %v2479 = vpack.c.b16 %v2456, %v2455
    %v2480 = vpack.c.b16 %v2458, %v2457
    %v2481 = vpack.c.b16 %v2460, %v2459
    %v2482 = vpack.c.b16 %v2462, %v2461
    %v2483 = vpack.c.b16 %v2464, %v2463
    %v2484 = vpack.c.b16 %v2466, %v2465
    %v2485 = vpack.c.b16 %v2468, %v2467
    %v2486 = vpack.c.b16 %v2470, %v2469
    %2503 = vmatprep.subr.bf16.mxu0 0
    %2504 = vmatpush1.bf16.msra.mxu0 %v2471
    %2505 = vmatprep.subr.bf16.mxu0 0
    %2506 = vmatpush1.bf16.msra.mxu0 %v2472
    %2507 = vmatprep.subr.bf16.mxu0 0
    %2508 = vmatpush1.bf16.msra.mxu0 %v2473
    %2509 = vmatprep.subr.bf16.mxu0 0
    %2510 = vmatpush1.bf16.msra.mxu0 %v2474
    %2511 = vmatprep.subr.bf16.mxu0 0
    %2512 = vmatpush1.bf16.msra.mxu0 %v2475
    %2513 = vmatprep.subr.bf16.mxu0 0
    %2514 = vmatpush1.bf16.msra.mxu0 %v2476
    %2515 = vmatprep.subr.bf16.mxu0 0
    %2516 = vmatpush1.bf16.msra.mxu0 %v2477
    %2517 = vmatprep.subr.bf16.mxu0 0
    %2518 = vmatpush1.bf16.msra.mxu0 %v2478
    %2519 = vmatprep.subr.bf16.mxu0 0
    %2520 = vmatpush1.bf16.msra.mxu0 %v2479
    %2521 = vmatprep.subr.bf16.mxu0 0
    %2522 = vmatpush1.bf16.msra.mxu0 %v2480
    %2523 = vmatprep.subr.bf16.mxu0 0
    %2524 = vmatpush1.bf16.msra.mxu0 %v2481
    %2525 = vmatprep.subr.bf16.mxu0 0
    %2526 = vmatpush1.bf16.msra.mxu0 %v2482
    %2527 = vmatprep.subr.bf16.mxu0 0
    %2528 = vmatpush1.bf16.msra.mxu0 %v2483
    %2529 = vmatprep.subr.bf16.mxu0 0
    %2530 = vmatpush1.bf16.msra.mxu0 %v2484
    %2531 = vmatprep.subr.bf16.mxu0 0
    %2532 = vmatpush1.bf16.msra.mxu0 %v2485
    %2533 = vmatprep.subr.bf16.mxu0 0
    %2534 = vmatpush1.bf16.msra.mxu0 %v2486
    %2535 = vmatprep.mubr.bf16.mxu0 %v2367
    %2536 = vmatmul.mubr.bf16.gmra.mrb[0].mxu0 %v2366
    %v2537 = vpop.f32.mrb[0].mxu0
    %v2538 = vadd.f32 %v2405, %v2537
    %v2539 = vpop.f32.mrb[0].mxu0
    %v2540 = vpop.f32.mrb[0].mxu0
    %v2541 = vadd.f32 %v2405, %v2540
    %v2542 = vpop.f32.mrb[0].mxu0
    %2543 = vdwg.mxu0
    %v2544 = vmax.f32 %v2538, 0.0
    %v2545 = vmax.f32 %v2541, 0.0
    %v2546 = vpack.c.bf16 %v2545, %v2544
    %v2547 = vld [vmem:[#allocation11] sm:$0xf]
    %v2548 = vld [vmem:[#allocation11 + $0x4] sm:$0xf]
    %v2549 = vld [vmem:[#allocation11 + $0x8] sm:$0xf]
    %v2550 = vld [vmem:[#allocation11 + $0xc] sm:$0xf]
    %v2551 = vld [vmem:[#allocation11 + $0x10] sm:$0xf]
    %v2552 = vld [vmem:[#allocation11 + $0x14] sm:$0xf]
    %v2553 = vld [vmem:[#allocation11 + $0x18] sm:$0xf]
    %v2554 = vld [vmem:[#allocation11 + $0x1c] sm:$0xf]
    %v2555 = vld [vmem:[#allocation11 + $0x20] sm:$0xf]
    %v2556 = vld [vmem:[#allocation11 + $0x24] sm:$0xf]
    %v2557 = vld [vmem:[#allocation11 + $0x28] sm:$0xf]
    %v2558 = vld [vmem:[#allocation11 + $0x2c] sm:$0xf]
    %v2559 = vld [vmem:[#allocation11 + $0x30] sm:$0xf]
    %v2560 = vld [vmem:[#allocation11 + $0x34] sm:$0xf]
    %v2561 = vld [vmem:[#allocation11 + $0x38] sm:$0xf]
    %v2562 = vld [vmem:[#allocation11 + $0x3c] sm:$0xf]
    %v2563 = vld [vmem:[%s8] sm:$0x1]
    %v2565 = vlaneseq
    %v2566 = vshrl.u32 %v2565, 7
    %v2567 = vsub.s32 0, %v2566
    %v2568 = vrot.slane %v2563, %v2567
    %v2586 = vunpack.c.l.b16 %v2547
    %v2587 = vunpack.c.l.b16 %v2548
    %v2588 = vunpack.c.l.b16 %v2549
    %v2589 = vunpack.c.l.b16 %v2550
    %v2590 = vunpack.c.l.b16 %v2551
    %v2591 = vunpack.c.l.b16 %v2552
    %v2592 = vunpack.c.l.b16 %v2553
    %v2593 = vunpack.c.l.b16 %v2554
    %v2594 = vunpack.c.l.b16 %v2555
    %v2595 = vunpack.c.l.b16 %v2556
    %v2596 = vunpack.c.l.b16 %v2557
    %v2597 = vunpack.c.l.b16 %v2558
    %v2598 = vunpack.c.l.b16 %v2559
    %v2599 = vunpack.c.l.b16 %v2560
    %v2600 = vunpack.c.l.b16 %v2561
    %v2601 = vunpack.c.l.b16 %v2562
    %v2602 = vpack.c.b16 %v2587, %v2586
    %v2603 = vpack.c.b16 %v2589, %v2588
    %v2604 = vpack.c.b16 %v2591, %v2590
    %v2605 = vpack.c.b16 %v2593, %v2592
    %v2606 = vpack.c.b16 %v2595, %v2594
    %v2607 = vpack.c.b16 %v2597, %v2596
    %v2608 = vpack.c.b16 %v2599, %v2598
    %v2609 = vpack.c.b16 %v2601, %v2600
    %2618 = vmatprep.subr.bf16.mxu0 0
    %2619 = vmatpush1.bf16.msra.mxu0 %v2602
    %2620 = vmatprep.subr.bf16.mxu0 0
    %2621 = vmatpush1.bf16.msra.mxu0 %v2603
    %2622 = vmatprep.subr.bf16.mxu0 0
    %2623 = vmatpush1.bf16.msra.mxu0 %v2604
    %2624 = vmatprep.subr.bf16.mxu0 0
    %2625 = vmatpush1.bf16.msra.mxu0 %v2605
    %2626 = vmatprep.subr.bf16.mxu0 0
    %2627 = vmatpush1.bf16.msra.mxu0 %v2606
    %2628 = vmatprep.subr.bf16.mxu0 0
    %2629 = vmatpush1.bf16.msra.mxu0 %v2607
    %2630 = vmatprep.subr.bf16.mxu0 0
    %2631 = vmatpush1.bf16.msra.mxu0 %v2608
    %2632 = vmatprep.subr.bf16.mxu0 0
    %2633 = vmatpush1.bf16.msra.mxu0 %v2609
    %2634 = vmatprep.subr.bf16.mxu0 0
    %2635 = vmatpush1.bf16.msra.mxu0 0
    %2636 = vmatprep.subr.bf16.mxu0 0
    %2637 = vmatpush1.bf16.msra.mxu0 0
    %2638 = vmatprep.subr.bf16.mxu0 0
    %2639 = vmatpush1.bf16.msra.mxu0 0
    %2640 = vmatprep.subr.bf16.mxu0 0
    %2641 = vmatpush1.bf16.msra.mxu0 0
    %2642 = vmatprep.subr.bf16.mxu0 0
    %2643 = vmatpush1.bf16.msra.mxu0 0
    %2644 = vmatprep.subr.bf16.mxu0 0
    %2645 = vmatpush1.bf16.msra.mxu0 0
    %2646 = vmatprep.subr.bf16.mxu0 0
    %2647 = vmatpush1.bf16.msra.mxu0 0
    %2648 = vmatprep.subr.bf16.mxu0 0
    %2649 = vmatpush1.bf16.msra.mxu0 0
    %2650 = vmatprep.mubr.bf16.mxu0 0
    %2651 = vmatmul.mubr.bf16.gmra.mrb[0].mxu0 %v2546
    %v2652 = vpop.f32.mrb[0].mxu0
    %v2653 = vadd.f32 %v2568, %v2652
    %v2654 = vpop.f32.mrb[0].mxu0
    %v2655 = vpop.f32.mrb[0].mxu0
    %v2656 = vadd.f32 %v2568, %v2655
    %v2657 = vpop.f32.mrb[0].mxu0
    %2658 = vdwg.mxu0
    %2659 = vst [vmem:[#allocation13] sm:$0xff] %v2653
    %2660 = vst [vmem:[#allocation13 + $0x8] sm:$0xff] %v2656
    // Predicated region
    $region62: #{_mlp_padded_call.1} parent=1 // pred_check
      _
    $region63: #{_mlp_padded_call.1} parent=1 // pred_check_branch
      %2662 = sbr.rel (0) target = $region65
    $region64: #{_mlp_padded_call.1} parent=1 // pred_region
      %s2664 = ssub.s32 256, 256
      %2665 = vsyncadd [#allocation4], %s2664
      %s2666 = sshll.u32 [#allocation13], 4
      %s2667 = int_to_ptr.vmem [resolvable:$true] %s2666
      %2672 = dma.vmem_to_hbm [thread:$0]  %s2667, 256, %s9, [#allocation4], 128, 128, 8
    $region65: #{_mlp_padded_call.1} parent=1 // pred_fallthru
      _
    // Predicated region
    $region66: #{_mlp_padded_call.1} parent=1 // pred_check
      _
    $region67: #{_mlp_padded_call.1} parent=1 // pred_check_branch
      %2674 = sbr.rel (0) target = $region69
    $region68: #{_mlp_padded_call.1} parent=1 // pred_region
      %2675 = dma.done [#allocation4], 256
    $region69: #{_mlp_padded_call.1} parent=1 // pred_fallthru
      _
    %2676 = vsyncpa [#allocation3], 1
    %2677 = vsyncpa [#allocation6], 1
    %2678 = vsyncpa [#allocation9], 1
    %2679 = vsyncpa [#allocation12], 1
    %2680 = vsyncpa [#allocation4], 1

</llo_original>
